<compile_context>
chip_gen: v7x
topology: tpu7x:2x2x1
jax: 0.10.0
libtpu: 0.0.40
codegen_flags: <defaults>
</compile_context>

<pallas_src>
import functools

import jax
import jax.numpy as jnp
from jax.experimental import pallas as pl
from jax.experimental.pallas import tpu as pltpu


def deepset_kernel(x_ref, batch_ref,
                   w1_ref, b1_ref, w2_ref, b2_ref,
                   w3_ref, b3_ref, w4_ref, b4_ref,
                   out_ref, seg_acc, cnt_acc, *, n_valid):
    step = pl.program_id(0)
    tile_n = x_ref.shape[0]
    num_graphs = seg_acc.shape[0]

    # ---- init accumulators on first tile ----
    @pl.when(step == 0)
    def _():
        seg_acc[...] = jnp.zeros_like(seg_acc)
        cnt_acc[...] = jnp.zeros_like(cnt_acc)

    x = x_ref[...]                 # [tile_n, node_dim] f32 (cast to bf16 below)
    batch = batch_ref[...]         # [1, tile_n] int32

    # ---- remainder-tile masking (static skip when tile_n divides N) ----
    needs_mask = (n_valid % tile_n) != 0
    if needs_mask:
        row_start = step * tile_n
        valid_r = (jax.lax.broadcasted_iota(jnp.int32, (tile_n, 1), 0)
                   + row_start) < n_valid
        valid_c = (jax.lax.broadcasted_iota(jnp.int32, (1, tile_n), 1)
                   + row_start) < n_valid
        # Zero invalid rows so undefined OOB data (possibly NaN) never reaches
        # the MXU; invalid one-hot columns are zeroed below.
        x = jnp.where(valid_r, x, 0.0)

    # ---- local_phi Lin1 + ReLU only (Lin2 hoisted past the mean) ----
    xb = x.astype(jnp.bfloat16)
    h = jnp.dot(xb, w1_ref[...], preferred_element_type=jnp.float32) + b1_ref[...]
    h = jnp.maximum(h, 0.0)        # [tile_n, hid_p] f32

    # ---- segment-sum via one-hot matmul (MXU) ----
    seg_ids = jax.lax.broadcasted_iota(jnp.int32, (num_graphs, tile_n), 0)
    hits = seg_ids == batch
    if needs_mask:
        hits = jnp.logical_and(hits, valid_c)
    onehot = hits.astype(jnp.bfloat16)          # 0/1 exactly representable
    seg_acc[...] += jnp.dot(onehot, h.astype(jnp.bfloat16),
                            preferred_element_type=jnp.float32)
    cnt_acc[...] += jnp.sum(onehot.astype(jnp.float32), axis=1, keepdims=True)

    # ---- finalize: mean -> (hoisted Lin2) -> global_rho MLP, last tile only ----
    @pl.when(step == pl.num_programs(0) - 1)
    def _():
        counts = cnt_acc[...]                               # [B, 1]
        inv = 1.0 / jnp.maximum(counts, 1.0)                # exact; runs once
        pooled = seg_acc[...] * inv                         # mean of ReLU(x@W1+b1)
        nonempty = (counts > 0.0).astype(jnp.float32)       # match ref for empty segs
        p2 = jnp.dot(pooled.astype(jnp.bfloat16), w2_ref[...],
                     preferred_element_type=jnp.float32) + b2_ref[...] * nonempty
        g = jnp.dot(p2.astype(jnp.bfloat16), w3_ref[...],
                    preferred_element_type=jnp.float32) + b3_ref[...]
        g = jnp.maximum(g, 0.0).astype(jnp.bfloat16)
        g = jnp.dot(g, w4_ref[...], preferred_element_type=jnp.float32) + b4_ref[...]
        out_ref[...] = g.astype(out_ref.dtype)


def _round_up(a, m):
    return ((a + m - 1) // m) * m


def deepset_forward(x, x_batch, params, num_graphs, *,
                    max_tile_n=1024, vmem_limit_bytes=32 * 1024 * 1024):
    """x: [N, node_dim] f32, x_batch: [N] int32 in [0, num_graphs)."""
    N, node_dim = x.shape
    hid_dim = params["w1"].shape[1]
    out_dim = params["w4"].shape[1]

    # Lane-dense padded feature widths (128 only — do not over-pad).
    hid_p = _round_up(hid_dim, 128)
    out_p = _round_up(out_dim, 128)

    # Node tiling: tile_n is a multiple of 128 (lane alignment of the batch-id
    # block); a single grid step when N fits one tile.
    max_tile_n = max(128, (max_tile_n // 128) * 128)
    tile_n = min(max_tile_n, _round_up(N, 128))
    num_tiles = (N + tile_n - 1) // tile_n

    # x passed through untouched (f32, unpadded); batch ids just reshaped to a
    # lane-major row.  Remainder masking happens in-kernel.
    batch_row = x_batch.astype(jnp.int32).reshape(1, N)

    # Zero-pad weights/biases to lane-dense widths; weights bf16 (MXU operand),
    # biases f32 (added after the f32-accumulated matmul).
    def pad_w(w, rows, cols):
        return jnp.zeros((rows, cols), jnp.bfloat16).at[
            :w.shape[0], :w.shape[1]].set(w.astype(jnp.bfloat16))

    def pad_b(b, cols):
        return jnp.zeros((1, cols), jnp.float32).at[:, :b.shape[1]].set(
            b.astype(jnp.float32))

    w1 = pad_w(params["w1"], node_dim, hid_p); b1 = pad_b(params["b1"], hid_p)
    w2 = pad_w(params["w2"], hid_p, hid_p);    b2 = pad_b(params["b2"], hid_p)
    w3 = pad_w(params["w3"], hid_p, hid_p);    b3 = pad_b(params["b3"], hid_p)
    w4 = pad_w(params["w4"], hid_p, out_p);    b4 = pad_b(params["b4"], out_p)

    # Single-buffer resident weights only when double-buffering them would be
    # expensive (v7x: 64 MiB physical VMEM).  False at small shapes, so the
    # Buffered path is never even constructed there.
    weight_dbuf_bytes = 2 * 2 * (node_dim * hid_p + 2 * hid_p * hid_p + hid_p * out_p)
    single_buffer_weights = weight_dbuf_bytes > (16 << 20)

    def const_spec(shape):
        # Constant block index -> DMA'd once, resident across the whole grid.
        if single_buffer_weights:
            return pl.BlockSpec(shape, lambda i: (0, 0),
                                pipeline_mode=pl.Buffered(1))
        return pl.BlockSpec(shape, lambda i: (0, 0))

    kernel = functools.partial(deepset_kernel, n_valid=N)

    out_padded = pl.pallas_call(
        kernel,
        out_shape=jax.ShapeDtypeStruct((num_graphs, out_p), jnp.float32),
        grid_spec=pltpu.PrefetchScalarGridSpec(
            num_scalar_prefetch=0,
            grid=(num_tiles,),
            in_specs=[
                pl.BlockSpec((tile_n, node_dim), lambda i: (i, 0)),   # x tile
                pl.BlockSpec((1, tile_n), lambda i: (0, i)),          # batch ids
                const_spec((node_dim, hid_p)), const_spec((1, hid_p)),  # w1, b1
                const_spec((hid_p, hid_p)),    const_spec((1, hid_p)),  # w2, b2
                const_spec((hid_p, hid_p)),    const_spec((1, hid_p)),  # w3, b3
                const_spec((hid_p, out_p)),    const_spec((1, out_p)),  # w4, b4
            ],
            out_specs=pl.BlockSpec((num_graphs, out_p), lambda i: (0, 0)),
            scratch_shapes=[
                pltpu.VMEM((num_graphs, hid_p), jnp.float32),   # seg_sum acc
                pltpu.VMEM((num_graphs, 1), jnp.float32),       # counts acc
            ],
        ),
        compiler_params=pltpu.CompilerParams(
            dimension_semantics=("arbitrary",),   # N axis is a reduction
            vmem_limit_bytes=vmem_limit_bytes,
        ),
    )(x, batch_row, w1, b1, w2, b2, w3, b3, w4, b4)

    return out_padded[:, :out_dim]


def init_params(key, node_dim, hid_dim, out_dim):
    """PyTorch-Linear-style uniform(-1/sqrt(fan_in), 1/sqrt(fan_in)) init."""
    def lin(k, fan_in, fan_out):
        kw, kb = jax.random.split(k)
        bound = 1.0 / jnp.sqrt(fan_in)
        w = jax.random.uniform(kw, (fan_in, fan_out), jnp.float32, -bound, bound)
        b = jax.random.uniform(kb, (1, fan_out), jnp.float32, -bound, bound)
        return w, b

    k1, k2, k3, k4 = jax.random.split(key, 4)
    w1, b1 = lin(k1, node_dim, hid_dim)
    w2, b2 = lin(k2, hid_dim, hid_dim)
    w3, b3 = lin(k3, hid_dim, hid_dim)
    w4, b4 = lin(k4, hid_dim, out_dim)
    return dict(w1=w1, b1=b1, w2=w2, b2=b2, w3=w3, b3=b3, w4=w4, b4=b4)


def deepset_reference(x, x_batch, params, num_graphs):
    """Pure-JAX f32 reference of the PyTorch module (for correctness check)."""
    h = jnp.maximum(x @ params["w1"] + params["b1"], 0.0) @ params["w2"] + params["b2"]
    seg_sum = jax.ops.segment_sum(h, x_batch, num_segments=num_graphs)
    counts = jax.ops.segment_sum(jnp.ones((x.shape[0],), jnp.float32), x_batch,
                                 num_segments=num_graphs)
    pooled = seg_sum / jnp.maximum(counts, 1.0)[:, None]
    g = jnp.maximum(pooled @ params["w3"] + params["b3"], 0.0) @ params["w4"] + params["b4"]
    return g


if __name__ == "__main__":
    # Small, module-consistent shapes.  N chosen so both code paths get
    # exercised: single-tile with a masked remainder (default max_tile_n) and
    # multi-tile accumulation with a partial last tile (max_tile_n=128).
    N = 300
    node_dim = 8
    hid_dim = 32
    out_dim = 16
    num_graphs = 3

    key = jax.random.PRNGKey(0)
    kx, kp = jax.random.split(key)
    x = jax.random.normal(kx, (N, node_dim), dtype=jnp.float32)
    # sorted segment ids (like torch_geometric batches): 100 / 120 / 80 nodes
    x_batch = jnp.concatenate([
        jnp.full((100,), 0, jnp.int32),
        jnp.full((120,), 1, jnp.int32),
        jnp.full((80,), 2, jnp.int32),
    ])

    params = init_params(kp, node_dim, hid_dim, out_dim)
    ref = deepset_reference(x, x_batch, params, num_graphs)

    # Path 1: default large tile -> single grid step, masked remainder rows.
    out1 = jax.block_until_ready(deepset_forward(x, x_batch, params, num_graphs))
    assert out1.shape == (num_graphs, out_dim)
    assert jnp.allclose(out1, ref, rtol=5e-2, atol=5e-2), (out1, ref)

    # Path 2: small tiles -> multi-step accumulation + partial last tile.
    out2 = jax.block_until_ready(
        deepset_forward(x, x_batch, params, num_graphs, max_tile_n=128))
    assert jnp.allclose(out2, ref, rtol=5e-2, atol=5e-2), (out2, ref)

    print("KERNEL_OK")
</pallas_src>

<mosaic_0001>
module attributes {stable_mosaic.version = 11 : i64} {
  func.func @deepset_kernel(%arg0: i32, %arg1: memref<384x8xf32, #tpu.memory_space<vmem>>, %arg2: memref<1x384xi32, #tpu.memory_space<vmem>>, %arg3: memref<8x128xbf16, #tpu.memory_space<vmem>>, %arg4: memref<1x128xf32, #tpu.memory_space<vmem>>, %arg5: memref<128x128xbf16, #tpu.memory_space<vmem>>, %arg6: memref<1x128xf32, #tpu.memory_space<vmem>>, %arg7: memref<128x128xbf16, #tpu.memory_space<vmem>>, %arg8: memref<1x128xf32, #tpu.memory_space<vmem>>, %arg9: memref<128x128xbf16, #tpu.memory_space<vmem>>, %arg10: memref<1x128xf32, #tpu.memory_space<vmem>>, %arg11: memref<3x128xf32, #tpu.memory_space<vmem>>, %arg12: memref<3x128xf32, #tpu.memory_space<vmem>>, %arg13: memref<3x1xf32, #tpu.memory_space<vmem>>) attributes {dimension_semantics = [#tpu.dimension_semantics<arbitrary>], iteration_bounds = array<i64: 1>, scalar_prefetch = 0 : i64, scratch_operands = 2 : i64, tpu.core_type = #tpu.core_type<tc>, window_params = [{transform_indices = @transform_0, window_bounds = array<i64: 384, 8>}, {transform_indices = @transform_1, window_bounds = array<i64: 1, 384>}, {pipeline_mode = #tpu.pipeline_mode<synchronous>, transform_indices = @transform_2, window_bounds = array<i64: 8, 128>}, {pipeline_mode = #tpu.pipeline_mode<synchronous>, transform_indices = @transform_3, window_bounds = array<i64: 1, 128>}, {pipeline_mode = #tpu.pipeline_mode<synchronous>, transform_indices = @transform_4, window_bounds = array<i64: 128, 128>}, {pipeline_mode = #tpu.pipeline_mode<synchronous>, transform_indices = @transform_5, window_bounds = array<i64: 1, 128>}, {pipeline_mode = #tpu.pipeline_mode<synchronous>, transform_indices = @transform_6, window_bounds = array<i64: 128, 128>}, {pipeline_mode = #tpu.pipeline_mode<synchronous>, transform_indices = @transform_7, window_bounds = array<i64: 1, 128>}, {pipeline_mode = #tpu.pipeline_mode<synchronous>, transform_indices = @transform_8, window_bounds = array<i64: 128, 128>}, {pipeline_mode = #tpu.pipeline_mode<synchronous>, transform_indices = @transform_9, window_bounds = array<i64: 1, 128>}, {pipeline_mode = #tpu.pipeline_mode<synchronous>, transform_indices = @transform_10, window_bounds = array<i64: 3, 128>}]} {
    %c0_i32 = arith.constant 0 : i32
    %0 = arith.cmpi eq, %arg0, %c0_i32 : i32
    %1 = arith.extui %0 : i1 to i32
    %c0_i32_0 = arith.constant 0 : i32
    %2 = arith.cmpi ne, %1, %c0_i32_0 : i32
    scf.if %2 {
      %cst_23 = arith.constant 0.000000e+00 : f32
      %50 = vector.broadcast %cst_23 : f32 to vector<3x128xf32>
      %c0_24 = arith.constant 0 : index
      %c0_25 = arith.constant 0 : index
      %51 = vector.load %arg12[%c0_24, %c0_25] : memref<3x128xf32, #tpu.memory_space<vmem>>, vector<3x128xf32>
      tpu.vector_store %arg12[%c0_24, %c0_25], %50 {strides = array<i32>} : memref<3x128xf32, #tpu.memory_space<vmem>>, vector<3x128xf32>,
      %cst_26 = arith.constant 0.000000e+00 : f32
      %52 = vector.broadcast %cst_26 : f32 to vector<3x1xf32>
      %c0_27 = arith.constant 0 : index
      %c0_28 = arith.constant 0 : index
      %53 = vector.load %arg13[%c0_27, %c0_28] : memref<3x1xf32, #tpu.memory_space<vmem>>, vector<3x1xf32>
      tpu.vector_store %arg13[%c0_27, %c0_28], %52 {strides = array<i32>} : memref<3x1xf32, #tpu.memory_space<vmem>>, vector<3x1xf32>,
    } else {
    }
    %c0 = arith.constant 0 : index
    %c0_1 = arith.constant 0 : index
    %3 = vector.load %arg1[%c0, %c0_1] : memref<384x8xf32, #tpu.memory_space<vmem>>, vector<384x8xf32>
    %c0_2 = arith.constant 0 : index
    %c0_3 = arith.constant 0 : index
    %4 = vector.load %arg2[%c0_2, %c0_3] : memref<1x384xi32, #tpu.memory_space<vmem>>, vector<1x384xi32>
    %c384_i32 = arith.constant 384 : i32
    %5 = arith.muli %arg0, %c384_i32 : i32
    %6 = tpu.iota {dimensions = array<i32: 0>} : vector<384x1xi32>
    %7 = vector.broadcast %5 : i32 to vector<384x1xi32>
    %8 = arith.addi %6, %7 : vector<384x1xi32>
    %c300_i32 = arith.constant 300 : i32
    %9 = vector.broadcast %c300_i32 : i32 to vector<384x1xi32>
    %10 = arith.cmpi slt, %8, %9 : vector<384x1xi32>
    %11 = tpu.iota {dimensions = array<i32: 1>} : vector<1x384xi32>
    %12 = vector.broadcast %5 : i32 to vector<1x384xi32>
    %13 = arith.addi %11, %12 : vector<1x384xi32>
    %c300_i32_4 = arith.constant 300 : i32
    %14 = vector.broadcast %c300_i32_4 : i32 to vector<1x384xi32>
    %15 = arith.cmpi slt, %13, %14 : vector<1x384xi32>
    %cst = arith.constant 0.000000e+00 : f32
    %16 = vector.shape_cast %10 : vector<384x1xi1> to vector<384x1xi1>
    %17 = vector.broadcast %16 : vector<384x1xi1> to vector<384x8xi1>
    %18 = vector.broadcast %cst : f32 to vector<384x8xf32>
    %19 = arith.select %17, %3, %18 : vector<384x8xi1>, vector<384x8xf32>
    %20 = arith.truncf %19 : vector<384x8xf32> to vector<384x8xbf16>
    %c0_5 = arith.constant 0 : index
    %c0_6 = arith.constant 0 : index
    %21 = vector.load %arg3[%c0_5, %c0_6] : memref<8x128xbf16, #tpu.memory_space<vmem>>, vector<8x128xbf16>
    %cst_7 = arith.constant dense<0.000000e+00> : vector<384x128xf32>
    %22 = tpu.matmul %20, %21, %cst_7 {dimension_numbers = #tpu.dot_dimension_numbers<[1], [0], [0], [1], [0, 0, 1, 1], [], []>} : vector<384x8xbf16>, vector<8x128xbf16>, vector<384x128xf32> -> vector<384x128xf32>
    %c0_8 = arith.constant 0 : index
    %c0_9 = arith.constant 0 : index
    %23 = vector.load %arg4[%c0_8, %c0_9] : memref<1x128xf32, #tpu.memory_space<vmem>>, vector<1x128xf32>
    %24 = vector.broadcast %23 : vector<1x128xf32> to vector<384x128xf32>
    %25 = arith.addf %22, %24 : vector<384x128xf32>
    %cst_10 = arith.constant 0.000000e+00 : f32
    %26 = vector.broadcast %cst_10 : f32 to vector<384x128xf32>
    %27 = arith.maximumf %25, %26 : vector<384x128xf32>
    %28 = tpu.iota {dimensions = array<i32: 0>} : vector<3x384xi32>
    %29 = vector.broadcast %4 : vector<1x384xi32> to vector<3x384xi32>
    %30 = arith.cmpi eq, %28, %29 : vector<3x384xi32>
    %31 = vector.broadcast %15 : vector<1x384xi1> to vector<3x384xi1>
    %32 = arith.andi %30, %31 : vector<3x384xi1>
    %33 = arith.extui %32 : vector<3x384xi1> to vector<3x384xi32>
    %34 = arith.sitofp %33 : vector<3x384xi32> to vector<3x384xf32>
    %35 = arith.truncf %34 : vector<3x384xf32> to vector<3x384xbf16>
    %c0_11 = arith.constant 0 : index
    %c0_12 = arith.constant 0 : index
    %36 = vector.load %arg12[%c0_11, %c0_12] : memref<3x128xf32, #tpu.memory_space<vmem>>, vector<3x128xf32>
    %37 = arith.truncf %27 : vector<384x128xf32> to vector<384x128xbf16>
    %cst_13 = arith.constant dense<0.000000e+00> : vector<3x128xf32>
    %38 = tpu.matmul %35, %37, %cst_13 {dimension_numbers = #tpu.dot_dimension_numbers<[1], [0], [0], [1], [0, 0, 1, 1], [], []>} : vector<3x384xbf16>, vector<384x128xbf16>, vector<3x128xf32> -> vector<3x128xf32>
    %39 = arith.addf %36, %38 : vector<3x128xf32>
    %c0_14 = arith.constant 0 : index
    %c0_15 = arith.constant 0 : index
    %40 = vector.load %arg12[%c0_14, %c0_15] : memref<3x128xf32, #tpu.memory_space<vmem>>, vector<3x128xf32>
    tpu.vector_store %arg12[%c0_14, %c0_15], %39 {strides = array<i32>} : memref<3x128xf32, #tpu.memory_space<vmem>>, vector<3x128xf32>,
    %c0_16 = arith.constant 0 : index
    %c0_17 = arith.constant 0 : index
    %41 = vector.load %arg13[%c0_16, %c0_17] : memref<3x1xf32, #tpu.memory_space<vmem>>, vector<3x1xf32>
    %42 = arith.extf %35 : vector<3x384xbf16> to vector<3x384xf32>
    %cst_18 = arith.constant dense<0.000000e+00> : vector<3xf32>
    %43 = vector.multi_reduction <add>, %42, %cst_18 [1] : vector<3x384xf32> to vector<3xf32>
    %44 = vector.shape_cast %43 : vector<3xf32> to vector<3x1xf32>
    %45 = arith.addf %41, %44 : vector<3x1xf32>
    %c0_19 = arith.constant 0 : index
    %c0_20 = arith.constant 0 : index
    %46 = vector.load %arg13[%c0_19, %c0_20] : memref<3x1xf32, #tpu.memory_space<vmem>>, vector<3x1xf32>
    tpu.vector_store %arg13[%c0_19, %c0_20], %45 {strides = array<i32>} : memref<3x1xf32, #tpu.memory_space<vmem>>, vector<3x1xf32>,
    %c0_i32_21 = arith.constant 0 : i32
    %47 = arith.cmpi eq, %arg0, %c0_i32_21 : i32
    %48 = arith.extui %47 : i1 to i32
    %c0_i32_22 = arith.constant 0 : i32
    %49 = arith.cmpi ne, %48, %c0_i32_22 : i32
    scf.if %49 {
      %c0_23 = arith.constant 0 : index
      %c0_24 = arith.constant 0 : index
      %50 = vector.load %arg13[%c0_23, %c0_24] : memref<3x1xf32, #tpu.memory_space<vmem>>, vector<3x1xf32>
      %cst_25 = arith.constant 1.000000e+00 : f32
      %51 = vector.broadcast %cst_25 : f32 to vector<3x1xf32>
      %52 = arith.maximumf %50, %51 : vector<3x1xf32>
      %cst_26 = arith.constant 1.000000e+00 : f32
      %53 = vector.broadcast %cst_26 : f32 to vector<3x1xf32>
      %54 = arith.divf %53, %52 : vector<3x1xf32>
      %c0_27 = arith.constant 0 : index
      %c0_28 = arith.constant 0 : index
      %55 = vector.load %arg12[%c0_27, %c0_28] : memref<3x128xf32, #tpu.memory_space<vmem>>, vector<3x128xf32>
      %56 = vector.broadcast %54 : vector<3x1xf32> to vector<3x128xf32>
      %57 = arith.mulf %55, %56 : vector<3x128xf32>
      %cst_29 = arith.constant 0.000000e+00 : f32
      %58 = vector.broadcast %cst_29 : f32 to vector<3x1xf32>
      %59 = arith.cmpf ogt, %50, %58 : vector<3x1xf32>
      %60 = arith.extui %59 : vector<3x1xi1> to vector<3x1xi32>
      %61 = arith.sitofp %60 : vector<3x1xi32> to vector<3x1xf32>
      %62 = arith.truncf %57 : vector<3x128xf32> to vector<3x128xbf16>
      %c0_30 = arith.constant 0 : index
      %c0_31 = arith.constant 0 : index
      %63 = vector.load %arg5[%c0_30, %c0_31] : memref<128x128xbf16, #tpu.memory_space<vmem>>, vector<128x128xbf16>
      %cst_32 = arith.constant dense<0.000000e+00> : vector<3x128xf32>
      %64 = tpu.matmul %62, %63, %cst_32 {dimension_numbers = #tpu.dot_dimension_numbers<[1], [0], [0], [1], [0, 0, 1, 1], [], []>} : vector<3x128xbf16>, vector<128x128xbf16>, vector<3x128xf32> -> vector<3x128xf32>
      %c0_33 = arith.constant 0 : index
      %c0_34 = arith.constant 0 : index
      %65 = vector.load %arg6[%c0_33, %c0_34] : memref<1x128xf32, #tpu.memory_space<vmem>>, vector<1x128xf32>
      %66 = vector.broadcast %65 : vector<1x128xf32> to vector<3x128xf32>
      %67 = vector.broadcast %61 : vector<3x1xf32> to vector<3x128xf32>
      %68 = arith.mulf %66, %67 : vector<3x128xf32>
      %69 = arith.addf %64, %68 : vector<3x128xf32>
      %70 = arith.truncf %69 : vector<3x128xf32> to vector<3x128xbf16>
      %c0_35 = arith.constant 0 : index
      %c0_36 = arith.constant 0 : index
      %71 = vector.load %arg7[%c0_35, %c0_36] : memref<128x128xbf16, #tpu.memory_space<vmem>>, vector<128x128xbf16>
      %cst_37 = arith.constant dense<0.000000e+00> : vector<3x128xf32>
      %72 = tpu.matmul %70, %71, %cst_37 {dimension_numbers = #tpu.dot_dimension_numbers<[1], [0], [0], [1], [0, 0, 1, 1], [], []>} : vector<3x128xbf16>, vector<128x128xbf16>, vector<3x128xf32> -> vector<3x128xf32>
      %c0_38 = arith.constant 0 : index
      %c0_39 = arith.constant 0 : index
      %73 = vector.load %arg8[%c0_38, %c0_39] : memref<1x128xf32, #tpu.memory_space<vmem>>, vector<1x128xf32>
      %74 = vector.broadcast %73 : vector<1x128xf32> to vector<3x128xf32>
      %75 = arith.addf %72, %74 : vector<3x128xf32>
      %cst_40 = arith.constant 0.000000e+00 : f32
      %76 = vector.broadcast %cst_40 : f32 to vector<3x128xf32>
      %77 = arith.maximumf %75, %76 : vector<3x128xf32>
      %78 = arith.truncf %77 : vector<3x128xf32> to vector<3x128xbf16>
      %c0_41 = arith.constant 0 : index
      %c0_42 = arith.constant 0 : index
      %79 = vector.load %arg9[%c0_41, %c0_42] : memref<128x128xbf16, #tpu.memory_space<vmem>>, vector<128x128xbf16>
      %cst_43 = arith.constant dense<0.000000e+00> : vector<3x128xf32>
      %80 = tpu.matmul %78, %79, %cst_43 {dimension_numbers = #tpu.dot_dimension_numbers<[1], [0], [0], [1], [0, 0, 1, 1], [], []>} : vector<3x128xbf16>, vector<128x128xbf16>, vector<3x128xf32> -> vector<3x128xf32>
      %c0_44 = arith.constant 0 : index
      %c0_45 = arith.constant 0 : index
      %81 = vector.load %arg10[%c0_44, %c0_45] : memref<1x128xf32, #tpu.memory_space<vmem>>, vector<1x128xf32>
      %82 = vector.broadcast %81 : vector<1x128xf32> to vector<3x128xf32>
      %83 = arith.addf %80, %82 : vector<3x128xf32>
      %c0_46 = arith.constant 0 : index
      %c0_47 = arith.constant 0 : index
      %84 = vector.load %arg11[%c0_46, %c0_47] : memref<3x128xf32, #tpu.memory_space<vmem>>, vector<3x128xf32>
      tpu.vector_store %arg11[%c0_46, %c0_47], %83 {strides = array<i32>} : memref<3x128xf32, #tpu.memory_space<vmem>>, vector<3x128xf32>,
    } else {
    }
    return
  }
  func.func @transform_0(%arg0: i32) -> (i32, i32) {
    %c0_i32 = arith.constant 0 : i32
    %c0_i32_0 = arith.constant 0 : i32
    return %arg0, %c0_i32 : i32, i32
  }
  func.func @transform_1(%arg0: i32) -> (i32, i32) {
    %c0_i32 = arith.constant 0 : i32
    %c0_i32_0 = arith.constant 0 : i32
    return %c0_i32, %arg0 : i32, i32
  }
  func.func @transform_2(%arg0: i32) -> (i32, i32) {
    %c0_i32 = arith.constant 0 : i32
    %c0_i32_0 = arith.constant 0 : i32
    %c0_i32_1 = arith.constant 0 : i32
    return %c0_i32, %c0_i32_0 : i32, i32
  }
  func.func @transform_3(%arg0: i32) -> (i32, i32) {
    %c0_i32 = arith.constant 0 : i32
    %c0_i32_0 = arith.constant 0 : i32
    %c0_i32_1 = arith.constant 0 : i32
    return %c0_i32, %c0_i32_0 : i32, i32
  }
  func.func @transform_4(%arg0: i32) -> (i32, i32) {
    %c0_i32 = arith.constant 0 : i32
    %c0_i32_0 = arith.constant 0 : i32
    %c0_i32_1 = arith.constant 0 : i32
    return %c0_i32, %c0_i32_0 : i32, i32
  }
  func.func @transform_5(%arg0: i32) -> (i32, i32) {
    %c0_i32 = arith.constant 0 : i32
    %c0_i32_0 = arith.constant 0 : i32
    %c0_i32_1 = arith.constant 0 : i32
    return %c0_i32, %c0_i32_0 : i32, i32
  }
  func.func @transform_6(%arg0: i32) -> (i32, i32) {
    %c0_i32 = arith.constant 0 : i32
    %c0_i32_0 = arith.constant 0 : i32
    %c0_i32_1 = arith.constant 0 : i32
    return %c0_i32, %c0_i32_0 : i32, i32
  }
  func.func @transform_7(%arg0: i32) -> (i32, i32) {
    %c0_i32 = arith.constant 0 : i32
    %c0_i32_0 = arith.constant 0 : i32
    %c0_i32_1 = arith.constant 0 : i32
    return %c0_i32, %c0_i32_0 : i32, i32
  }
  func.func @transform_8(%arg0: i32) -> (i32, i32) {
    %c0_i32 = arith.constant 0 : i32
    %c0_i32_0 = arith.constant 0 : i32
    %c0_i32_1 = arith.constant 0 : i32
    return %c0_i32, %c0_i32_0 : i32, i32
  }
  func.func @transform_9(%arg0: i32) -> (i32, i32) {
    %c0_i32 = arith.constant 0 : i32
    %c0_i32_0 = arith.constant 0 : i32
    %c0_i32_1 = arith.constant 0 : i32
    return %c0_i32, %c0_i32_0 : i32, i32
  }
  func.func @transform_10(%arg0: i32) -> (i32, i32) {
    %c0_i32 = arith.constant 0 : i32
    %c0_i32_0 = arith.constant 0 : i32
    %c0_i32_1 = arith.constant 0 : i32
    return %c0_i32, %c0_i32_0 : i32, i32
  }
}

</mosaic_0001>

<llo_original>
// kernel: tpu_custom_call.1
$region0: #{tpu_custom_call.1}
  #allocation0 [shape = 'u32[]', space=smem, size = 0x4, offset = 0x4, fixed_abs, tag = 'smem constant byte address 0x4 - core index']
  #allocation1 [shape = 'u32[144,128]{1,0:T(1,128)}', space=vmem, size = 0x12000, scoped, tag = 'internal scratch']
  #allocation2 [shape = 'f32[3,128]{1,0:T(4,128)}', space=vmem, size = 0x800, scoped, tag = 'scratch operand']
  #allocation3 [shape = 'f32[3,1]{1,0:T(4,128)}', space=vmem, size = 0x800, scoped, tag = 'scratch operand']
  %s0 = inlined_call_operand.vmem [shape: f32[300,8], index: 0, kind: input, shape index: {}]
  %s1 = inlined_call_operand.vmem [shape: s32[1,300], index: 1, kind: input, shape index: {}]
  %s2 = inlined_call_operand.vmem [shape: bf16[8,128], index: 2, kind: input, shape index: {}]
  %s3 = inlined_call_operand.vmem [shape: f32[1,128], index: 3, kind: input, shape index: {}]
  %s4 = inlined_call_operand.vmem [shape: bf16[128,128], index: 4, kind: input, shape index: {}]
  %s5 = inlined_call_operand.vmem [shape: f32[1,128], index: 5, kind: input, shape index: {}]
  %s6 = inlined_call_operand.vmem [shape: bf16[128,128], index: 6, kind: input, shape index: {}]
  %s7 = inlined_call_operand.vmem [shape: f32[1,128], index: 7, kind: input, shape index: {}]
  %s8 = inlined_call_operand.vmem [shape: bf16[128,128], index: 8, kind: input, shape index: {}]
  %s9 = inlined_call_operand.vmem [shape: f32[1,128], index: 9, kind: input, shape index: {}]
  %s10 = inlined_call_operand.hbm [shape: f32[3,128], index: 10, kind: output, shape index: {}]
  %s11 = sld [smem:[#allocation0]]
  $region58: #{tpu_custom_call.1} parent=0
    _
  %s13 = ssub.s32 1, %s11
  %s14 = scalar_select 0, %s13, %s11
  $region1: #{tpu_custom_call.1} parent=0
    #allocation4 [shape = 'u8[2048]{0}', space=vmem, size = 0x800, scoped, tag = 'output window, operand 0, single buffered']
    #allocation5 [shape = 's32[1]{0}', space=sflag, size = 0x4, scoped, tag = 'scoped memory for tpu_custom_call.1']
    %15 = vsyncpa [#allocation5], 0
    // Predicated region
    $region2: #{tpu_custom_call.1} parent=1 // pred_check
      _
    $region3: #{tpu_custom_call.1} parent=1 // pred_check_branch
      %17 = sbr.rel (0) target = $region5
    $region4: #{tpu_custom_call.1} parent=1 // pred_region
      _
    $region5: #{tpu_custom_call.1} parent=1 // pred_fallthru
      _
    // Predicated region
    $region6: #{tpu_custom_call.1} parent=1 // pred_check
      _
    $region7: #{tpu_custom_call.1} parent=1 // pred_check_branch
      %19 = sbr.rel (0) target = $region9
    $region8: #{tpu_custom_call.1} parent=1 // pred_region
      _
    $region9: #{tpu_custom_call.1} parent=1 // pred_fallthru
      _
    // Predicated region
    $region10: #{tpu_custom_call.1} parent=1 // pred_check
      _
    $region11: #{tpu_custom_call.1} parent=1 // pred_check_branch
      %21 = sbr.rel (0) target = $region13
    $region12: #{tpu_custom_call.1} parent=1 // pred_region
      _
    $region13: #{tpu_custom_call.1} parent=1 // pred_fallthru
      _
    // Predicated region
    $region14: #{tpu_custom_call.1} parent=1 // pred_check
      _
    $region15: #{tpu_custom_call.1} parent=1 // pred_check_branch
      %23 = sbr.rel (0) target = $region17
    $region16: #{tpu_custom_call.1} parent=1 // pred_region
      _
    $region17: #{tpu_custom_call.1} parent=1 // pred_fallthru
      _
    // Predicated region
    $region18: #{tpu_custom_call.1} parent=1 // pred_check
      _
    $region19: #{tpu_custom_call.1} parent=1 // pred_check_branch
      %25 = sbr.rel (0) target = $region21
    $region20: #{tpu_custom_call.1} parent=1 // pred_region
      _
    $region21: #{tpu_custom_call.1} parent=1 // pred_fallthru
      _
    // Predicated region
    $region22: #{tpu_custom_call.1} parent=1 // pred_check
      _
    $region23: #{tpu_custom_call.1} parent=1 // pred_check_branch
      %27 = sbr.rel (0) target = $region25
    $region24: #{tpu_custom_call.1} parent=1 // pred_region
      _
    $region25: #{tpu_custom_call.1} parent=1 // pred_fallthru
      _
    // Predicated region
    $region26: #{tpu_custom_call.1} parent=1 // pred_check
      _
    $region27: #{tpu_custom_call.1} parent=1 // pred_check_branch
      %29 = sbr.rel (0) target = $region29
    $region28: #{tpu_custom_call.1} parent=1 // pred_region
      _
    $region29: #{tpu_custom_call.1} parent=1 // pred_fallthru
      _
    // Predicated region
    $region30: #{tpu_custom_call.1} parent=1 // pred_check
      _
    $region31: #{tpu_custom_call.1} parent=1 // pred_check_branch
      %31 = sbr.rel (0) target = $region33
    $region32: #{tpu_custom_call.1} parent=1 // pred_region
      _
    $region33: #{tpu_custom_call.1} parent=1 // pred_fallthru
      _
    // Predicated region
    $region34: #{tpu_custom_call.1} parent=1 // pred_check
      _
    $region35: #{tpu_custom_call.1} parent=1 // pred_check_branch
      %33 = sbr.rel (0) target = $region37
    $region36: #{tpu_custom_call.1} parent=1 // pred_region
      _
    $region37: #{tpu_custom_call.1} parent=1 // pred_fallthru
      _
    // Predicated region
    $region38: #{tpu_custom_call.1} parent=1 // pred_check
      _
    $region39: #{tpu_custom_call.1} parent=1 // pred_check_branch
      %35 = sbr.rel (0) target = $region41
    $region40: #{tpu_custom_call.1} parent=1 // pred_region
      _
    $region41: #{tpu_custom_call.1} parent=1 // pred_fallthru
      _
    %p37 = scmp.eq.s32.totalorder 0, 0
    // Predicated region
    $region42: #{tpu_custom_call.1} parent=1 // pred_check
      %p38 = pneg %p37
    $region43: #{tpu_custom_call.1} parent=1 // pred_check_branch
      %40 = sbr.rel (%p38) target = $region45
    $region44: #{tpu_custom_call.1} parent=1 // pred_region
      %41 = vst [vmem:[#allocation2] sm:$0x7] 0.0
      %vm42 = vcmask 2048
      %43 = vst.msk [vmem:[#allocation3] sm:$0x7] %vm42, 0.0
    $region45: #{tpu_custom_call.1} parent=1 // pred_fallthru
      _
    %v44 = vld [vmem:[%s0] sm:$0xff]
    %v45 = vld [vmem:[%s0 + $0x8] sm:$0xff]
    %v46 = vld [vmem:[%s0 + $0x10] sm:$0xff]
    %v47 = vld [vmem:[%s0 + $0x18] sm:$0xff]
    %v48 = vld [vmem:[%s0 + $0x20] sm:$0xff]
    %v49 = vld [vmem:[%s0 + $0x28] sm:$0xff]
    %v50 = vld [vmem:[%s0 + $0x30] sm:$0xff]
    %v51 = vld [vmem:[%s0 + $0x38] sm:$0xff]
    %v52 = vld [vmem:[%s0 + $0x40] sm:$0xff]
    %v53 = vld [vmem:[%s0 + $0x48] sm:$0xff]
    %v54 = vld [vmem:[%s0 + $0x50] sm:$0xff]
    %v55 = vld [vmem:[%s0 + $0x58] sm:$0xff]
    %v56 = vld [vmem:[%s0 + $0x60] sm:$0xff]
    %v57 = vld [vmem:[%s0 + $0x68] sm:$0xff]
    %v58 = vld [vmem:[%s0 + $0x70] sm:$0xff]
    %v59 = vld [vmem:[%s0 + $0x78] sm:$0xff]
    %v60 = vld [vmem:[%s0 + $0x80] sm:$0xff]
    %v61 = vld [vmem:[%s0 + $0x88] sm:$0xff]
    %v62 = vld [vmem:[%s0 + $0x90] sm:$0xff]
    %v63 = vld [vmem:[%s0 + $0x98] sm:$0xff]
    %v64 = vld [vmem:[%s0 + $0xa0] sm:$0xff]
    %v65 = vld [vmem:[%s0 + $0xa8] sm:$0xff]
    %v66 = vld [vmem:[%s0 + $0xb0] sm:$0xff]
    %v67 = vld [vmem:[%s0 + $0xb8] sm:$0xff]
    %v68 = vld [vmem:[%s0 + $0xc0] sm:$0xff]
    %v69 = vld [vmem:[%s0 + $0xc8] sm:$0xff]
    %v70 = vld [vmem:[%s0 + $0xd0] sm:$0xff]
    %v71 = vld [vmem:[%s0 + $0xd8] sm:$0xff]
    %v72 = vld [vmem:[%s0 + $0xe0] sm:$0xff]
    %v73 = vld [vmem:[%s0 + $0xe8] sm:$0xff]
    %v74 = vld [vmem:[%s0 + $0xf0] sm:$0xff]
    %v75 = vld [vmem:[%s0 + $0xf8] sm:$0xff]
    %v76 = vld [vmem:[%s0 + $0x100] sm:$0xff]
    %v77 = vld [vmem:[%s0 + $0x108] sm:$0xff]
    %v78 = vld [vmem:[%s0 + $0x110] sm:$0xff]
    %v79 = vld [vmem:[%s0 + $0x118] sm:$0xff]
    %v80 = vld [vmem:[%s0 + $0x120] sm:$0xff]
    %v81 = vld [vmem:[%s0 + $0x128] sm:$0xff]
    %v82 = vld [vmem:[%s0 + $0x130] sm:$0xff]
    %v83 = vld [vmem:[%s0 + $0x138] sm:$0xff]
    %v84 = vld [vmem:[%s0 + $0x140] sm:$0xff]
    %v85 = vld [vmem:[%s0 + $0x148] sm:$0xff]
    %v86 = vld [vmem:[%s0 + $0x150] sm:$0xff]
    %v87 = vld [vmem:[%s0 + $0x158] sm:$0xff]
    %v88 = vld [vmem:[%s0 + $0x160] sm:$0xff]
    %v89 = vld [vmem:[%s0 + $0x168] sm:$0xff]
    %v90 = vld [vmem:[%s0 + $0x170] sm:$0xff]
    %v91 = vld [vmem:[%s0 + $0x178] sm:$0xff]
    %v92 = vld [vmem:[%s1] sm:$0x7]
    %s93 = smul.u32 0, 384
    %v94 = vlaneseq
    %v95 = vshrl.u32 %v94, 7
    %v96 = vadd.s32 %v95, 8
    %v97 = vadd.s32 %v95, 16
    %v98 = vadd.s32 %v95, 24
    %v99 = vadd.s32 %v95, 32
    %v100 = vadd.s32 %v95, 40
    %v101 = vadd.s32 %v95, 48
    %v102 = vadd.s32 %v95, 56
    %v103 = vadd.s32 %v95, 64
    %v104 = vadd.s32 %v95, 72
    %v105 = vadd.s32 %v95, 80
    %v106 = vadd.s32 %v95, 88
    %v107 = vadd.s32 %v95, 96
    %v108 = vadd.s32 %v95, 104
    %v109 = vadd.s32 %v95, 112
    %v110 = vadd.s32 %v95, 120
    %v111 = vadd.s32 %v95, 128
    %v112 = vadd.s32 %v95, 136
    %v113 = vadd.s32 %v95, 144
    %v114 = vadd.s32 %v95, 152
    %v115 = vadd.s32 %v95, 160
    %v116 = vadd.s32 %v95, 168
    %v117 = vadd.s32 %v95, 176
    %v118 = vadd.s32 %v95, 184
    %v119 = vadd.s32 %v95, 192
    %v120 = vadd.s32 %v95, 200
    %v121 = vadd.s32 %v95, 208
    %v122 = vadd.s32 %v95, 216
    %v123 = vadd.s32 %v95, 224
    %v124 = vadd.s32 %v95, 232
    %v125 = vadd.s32 %v95, 240
    %v126 = vadd.s32 %v95, 248
    %v127 = vadd.s32 %v95, 256
    %v128 = vadd.s32 %v95, 264
    %v129 = vadd.s32 %v95, 272
    %v130 = vadd.s32 %v95, 280
    %v131 = vadd.s32 %v95, 288
    %v132 = vadd.s32 %v95, 296
    %v133 = vadd.s32 %v95, 304
    %v134 = vadd.s32 %v95, 312
    %v135 = vadd.s32 %v95, 320
    %v136 = vadd.s32 %v95, 328
    %v137 = vadd.s32 %v95, 336
    %v138 = vadd.s32 %v95, 344
    %v139 = vadd.s32 %v95, 352
    %v140 = vadd.s32 %v95, 360
    %v141 = vadd.s32 %v95, 368
    %v142 = vadd.s32 %v95, 376
    %v143 = vstv %s93
    %v144 = vadd.s32 %v95, %v143
    %v145 = vadd.s32 %v96, %v143
    %v146 = vadd.s32 %v97, %v143
    %v147 = vadd.s32 %v98, %v143
    %v148 = vadd.s32 %v99, %v143
    %v149 = vadd.s32 %v100, %v143
    %v150 = vadd.s32 %v101, %v143
    %v151 = vadd.s32 %v102, %v143
    %v152 = vadd.s32 %v103, %v143
    %v153 = vadd.s32 %v104, %v143
    %v154 = vadd.s32 %v105, %v143
    %v155 = vadd.s32 %v106, %v143
    %v156 = vadd.s32 %v107, %v143
    %v157 = vadd.s32 %v108, %v143
    %v158 = vadd.s32 %v109, %v143
    %v159 = vadd.s32 %v110, %v143
    %v160 = vadd.s32 %v111, %v143
    %v161 = vadd.s32 %v112, %v143
    %v162 = vadd.s32 %v113, %v143
    %v163 = vadd.s32 %v114, %v143
    %v164 = vadd.s32 %v115, %v143
    %v165 = vadd.s32 %v116, %v143
    %v166 = vadd.s32 %v117, %v143
    %v167 = vadd.s32 %v118, %v143
    %v168 = vadd.s32 %v119, %v143
    %v169 = vadd.s32 %v120, %v143
    %v170 = vadd.s32 %v121, %v143
    %v171 = vadd.s32 %v122, %v143
    %v172 = vadd.s32 %v123, %v143
    %v173 = vadd.s32 %v124, %v143
    %v174 = vadd.s32 %v125, %v143
    %v175 = vadd.s32 %v126, %v143
    %v176 = vadd.s32 %v127, %v143
    %v177 = vadd.s32 %v128, %v143
    %v178 = vadd.s32 %v129, %v143
    %v179 = vadd.s32 %v130, %v143
    %v180 = vadd.s32 %v131, %v143
    %v181 = vadd.s32 %v132, %v143
    %v182 = vadd.s32 %v133, %v143
    %v183 = vadd.s32 %v134, %v143
    %v184 = vadd.s32 %v135, %v143
    %v185 = vadd.s32 %v136, %v143
    %v186 = vadd.s32 %v137, %v143
    %v187 = vadd.s32 %v138, %v143
    %v188 = vadd.s32 %v139, %v143
    %v189 = vadd.s32 %v140, %v143
    %v190 = vadd.s32 %v141, %v143
    %v191 = vadd.s32 %v142, %v143
    %vm192 = vcmp.lt.s32.totalorder %v144, 300
    %vm193 = vcmp.lt.s32.totalorder %v145, 300
    %vm194 = vcmp.lt.s32.totalorder %v146, 300
    %vm195 = vcmp.lt.s32.totalorder %v147, 300
    %vm196 = vcmp.lt.s32.totalorder %v148, 300
    %vm197 = vcmp.lt.s32.totalorder %v149, 300
    %vm198 = vcmp.lt.s32.totalorder %v150, 300
    %vm199 = vcmp.lt.s32.totalorder %v151, 300
    %vm200 = vcmp.lt.s32.totalorder %v152, 300
    %vm201 = vcmp.lt.s32.totalorder %v153, 300
    %vm202 = vcmp.lt.s32.totalorder %v154, 300
    %vm203 = vcmp.lt.s32.totalorder %v155, 300
    %vm204 = vcmp.lt.s32.totalorder %v156, 300
    %vm205 = vcmp.lt.s32.totalorder %v157, 300
    %vm206 = vcmp.lt.s32.totalorder %v158, 300
    %vm207 = vcmp.lt.s32.totalorder %v159, 300
    %vm208 = vcmp.lt.s32.totalorder %v160, 300
    %vm209 = vcmp.lt.s32.totalorder %v161, 300
    %vm210 = vcmp.lt.s32.totalorder %v162, 300
    %vm211 = vcmp.lt.s32.totalorder %v163, 300
    %vm212 = vcmp.lt.s32.totalorder %v164, 300
    %vm213 = vcmp.lt.s32.totalorder %v165, 300
    %vm214 = vcmp.lt.s32.totalorder %v166, 300
    %vm215 = vcmp.lt.s32.totalorder %v167, 300
    %vm216 = vcmp.lt.s32.totalorder %v168, 300
    %vm217 = vcmp.lt.s32.totalorder %v169, 300
    %vm218 = vcmp.lt.s32.totalorder %v170, 300
    %vm219 = vcmp.lt.s32.totalorder %v171, 300
    %vm220 = vcmp.lt.s32.totalorder %v172, 300
    %vm221 = vcmp.lt.s32.totalorder %v173, 300
    %vm222 = vcmp.lt.s32.totalorder %v174, 300
    %vm223 = vcmp.lt.s32.totalorder %v175, 300
    %vm224 = vcmp.lt.s32.totalorder %v176, 300
    %vm225 = vcmp.lt.s32.totalorder %v177, 300
    %vm226 = vcmp.lt.s32.totalorder %v178, 300
    %vm227 = vcmp.lt.s32.totalorder %v179, 300
    %vm228 = vcmp.lt.s32.totalorder %v180, 300
    %vm229 = vcmp.lt.s32.totalorder %v181, 300
    %vm230 = vcmp.lt.s32.totalorder %v182, 300
    %vm231 = vcmp.lt.s32.totalorder %v183, 300
    %vm232 = vcmp.lt.s32.totalorder %v184, 300
    %vm233 = vcmp.lt.s32.totalorder %v185, 300
    %vm234 = vcmp.lt.s32.totalorder %v186, 300
    %vm235 = vcmp.lt.s32.totalorder %v187, 300
    %vm236 = vcmp.lt.s32.totalorder %v188, 300
    %vm237 = vcmp.lt.s32.totalorder %v189, 300
    %vm238 = vcmp.lt.s32.totalorder %v190, 300
    %vm239 = vcmp.lt.s32.totalorder %v191, 300
    %v240 = vlaneseq
    %v241 = vand.u32 %v240, 127
    %v242 = vadd.s32 %v241, 128
    %v243 = vadd.s32 %v241, 256
    %v244 = vadd.s32 %v241, %v143
    %v245 = vadd.s32 %v242, %v143
    %v246 = vadd.s32 %v243, %v143
    %vm247 = vcmp.lt.s32.totalorder %v244, 300
    %vm248 = vcmp.lt.s32.totalorder %v245, 300
    %vm249 = vcmp.lt.s32.totalorder %v246, 300
    %v250 = vsel %vm192, 1, 0
    %v251 = vsel %vm193, 1, 0
    %v252 = vsel %vm194, 1, 0
    %v253 = vsel %vm195, 1, 0
    %v254 = vsel %vm196, 1, 0
    %v255 = vsel %vm197, 1, 0
    %v256 = vsel %vm198, 1, 0
    %v257 = vsel %vm199, 1, 0
    %v258 = vsel %vm200, 1, 0
    %v259 = vsel %vm201, 1, 0
    %v260 = vsel %vm202, 1, 0
    %v261 = vsel %vm203, 1, 0
    %v262 = vsel %vm204, 1, 0
    %v263 = vsel %vm205, 1, 0
    %v264 = vsel %vm206, 1, 0
    %v265 = vsel %vm207, 1, 0
    %v266 = vsel %vm208, 1, 0
    %v267 = vsel %vm209, 1, 0
    %v268 = vsel %vm210, 1, 0
    %v269 = vsel %vm211, 1, 0
    %v270 = vsel %vm212, 1, 0
    %v271 = vsel %vm213, 1, 0
    %v272 = vsel %vm214, 1, 0
    %v273 = vsel %vm215, 1, 0
    %v274 = vsel %vm216, 1, 0
    %v275 = vsel %vm217, 1, 0
    %v276 = vsel %vm218, 1, 0
    %v277 = vsel %vm219, 1, 0
    %v278 = vsel %vm220, 1, 0
    %v279 = vsel %vm221, 1, 0
    %v280 = vsel %vm222, 1, 0
    %v281 = vsel %vm223, 1, 0
    %v282 = vsel %vm224, 1, 0
    %v283 = vsel %vm225, 1, 0
    %v284 = vsel %vm226, 1, 0
    %v285 = vsel %vm227, 1, 0
    %v286 = vsel %vm228, 1, 0
    %v287 = vsel %vm229, 1, 0
    %v288 = vsel %vm230, 1, 0
    %v289 = vsel %vm231, 1, 0
    %v290 = vsel %vm232, 1, 0
    %v291 = vsel %vm233, 1, 0
    %v292 = vsel %vm234, 1, 0
    %v293 = vsel %vm235, 1, 0
    %v294 = vsel %vm236, 1, 0
    %v295 = vsel %vm237, 1, 0
    %v296 = vsel %vm238, 1, 0
    %v297 = vsel %vm239, 1, 0
    %vm298 = vcmp.eq.s32.totalorder %v250, 1
    %vm299 = vcmp.eq.s32.totalorder %v251, 1
    %vm300 = vcmp.eq.s32.totalorder %v252, 1
    %vm301 = vcmp.eq.s32.totalorder %v253, 1
    %vm302 = vcmp.eq.s32.totalorder %v254, 1
    %vm303 = vcmp.eq.s32.totalorder %v255, 1
    %vm304 = vcmp.eq.s32.totalorder %v256, 1
    %vm305 = vcmp.eq.s32.totalorder %v257, 1
    %vm306 = vcmp.eq.s32.totalorder %v258, 1
    %vm307 = vcmp.eq.s32.totalorder %v259, 1
    %vm308 = vcmp.eq.s32.totalorder %v260, 1
    %vm309 = vcmp.eq.s32.totalorder %v261, 1
    %vm310 = vcmp.eq.s32.totalorder %v262, 1
    %vm311 = vcmp.eq.s32.totalorder %v263, 1
    %vm312 = vcmp.eq.s32.totalorder %v264, 1
    %vm313 = vcmp.eq.s32.totalorder %v265, 1
    %vm314 = vcmp.eq.s32.totalorder %v266, 1
    %vm315 = vcmp.eq.s32.totalorder %v267, 1
    %vm316 = vcmp.eq.s32.totalorder %v268, 1
    %vm317 = vcmp.eq.s32.totalorder %v269, 1
    %vm318 = vcmp.eq.s32.totalorder %v270, 1
    %vm319 = vcmp.eq.s32.totalorder %v271, 1
    %vm320 = vcmp.eq.s32.totalorder %v272, 1
    %vm321 = vcmp.eq.s32.totalorder %v273, 1
    %vm322 = vcmp.eq.s32.totalorder %v274, 1
    %vm323 = vcmp.eq.s32.totalorder %v275, 1
    %vm324 = vcmp.eq.s32.totalorder %v276, 1
    %vm325 = vcmp.eq.s32.totalorder %v277, 1
    %vm326 = vcmp.eq.s32.totalorder %v278, 1
    %vm327 = vcmp.eq.s32.totalorder %v279, 1
    %vm328 = vcmp.eq.s32.totalorder %v280, 1
    %vm329 = vcmp.eq.s32.totalorder %v281, 1
    %vm330 = vcmp.eq.s32.totalorder %v282, 1
    %vm331 = vcmp.eq.s32.totalorder %v283, 1
    %vm332 = vcmp.eq.s32.totalorder %v284, 1
    %vm333 = vcmp.eq.s32.totalorder %v285, 1
    %vm334 = vcmp.eq.s32.totalorder %v286, 1
    %vm335 = vcmp.eq.s32.totalorder %v287, 1
    %vm336 = vcmp.eq.s32.totalorder %v288, 1
    %vm337 = vcmp.eq.s32.totalorder %v289, 1
    %vm338 = vcmp.eq.s32.totalorder %v290, 1
    %vm339 = vcmp.eq.s32.totalorder %v291, 1
    %vm340 = vcmp.eq.s32.totalorder %v292, 1
    %vm341 = vcmp.eq.s32.totalorder %v293, 1
    %vm342 = vcmp.eq.s32.totalorder %v294, 1
    %vm343 = vcmp.eq.s32.totalorder %v295, 1
    %vm344 = vcmp.eq.s32.totalorder %v296, 1
    %vm345 = vcmp.eq.s32.totalorder %v297, 1
    %v346 = vsel %vm298, %v44, 0.0
    %v347 = vsel %vm299, %v45, 0.0
    %v348 = vsel %vm300, %v46, 0.0
    %v349 = vsel %vm301, %v47, 0.0
    %v350 = vsel %vm302, %v48, 0.0
    %v351 = vsel %vm303, %v49, 0.0
    %v352 = vsel %vm304, %v50, 0.0
    %v353 = vsel %vm305, %v51, 0.0
    %v354 = vsel %vm306, %v52, 0.0
    %v355 = vsel %vm307, %v53, 0.0
    %v356 = vsel %vm308, %v54, 0.0
    %v357 = vsel %vm309, %v55, 0.0
    %v358 = vsel %vm310, %v56, 0.0
    %v359 = vsel %vm311, %v57, 0.0
    %v360 = vsel %vm312, %v58, 0.0
    %v361 = vsel %vm313, %v59, 0.0
    %v362 = vsel %vm314, %v60, 0.0
    %v363 = vsel %vm315, %v61, 0.0
    %v364 = vsel %vm316, %v62, 0.0
    %v365 = vsel %vm317, %v63, 0.0
    %v366 = vsel %vm318, %v64, 0.0
    %v367 = vsel %vm319, %v65, 0.0
    %v368 = vsel %vm320, %v66, 0.0
    %v369 = vsel %vm321, %v67, 0.0
    %v370 = vsel %vm322, %v68, 0.0
    %v371 = vsel %vm323, %v69, 0.0
    %v372 = vsel %vm324, %v70, 0.0
    %v373 = vsel %vm325, %v71, 0.0
    %v374 = vsel %vm326, %v72, 0.0
    %v375 = vsel %vm327, %v73, 0.0
    %v376 = vsel %vm328, %v74, 0.0
    %v377 = vsel %vm329, %v75, 0.0
    %v378 = vsel %vm330, %v76, 0.0
    %v379 = vsel %vm331, %v77, 0.0
    %v380 = vsel %vm332, %v78, 0.0
    %v381 = vsel %vm333, %v79, 0.0
    %v382 = vsel %vm334, %v80, 0.0
    %v383 = vsel %vm335, %v81, 0.0
    %v384 = vsel %vm336, %v82, 0.0
    %v385 = vsel %vm337, %v83, 0.0
    %v386 = vsel %vm338, %v84, 0.0
    %v387 = vsel %vm339, %v85, 0.0
    %v388 = vsel %vm340, %v86, 0.0
    %v389 = vsel %vm341, %v87, 0.0
    %v390 = vsel %vm342, %v88, 0.0
    %v391 = vsel %vm343, %v89, 0.0
    %v392 = vsel %vm344, %v90, 0.0
    %v393 = vsel %vm345, %v91, 0.0
    %v394 = vpack.c.bf16 %v347, %v346
    %v395 = vpack.c.bf16 %v349, %v348
    %v396 = vpack.c.bf16 %v351, %v350
    %v397 = vpack.c.bf16 %v353, %v352
    %v398 = vpack.c.bf16 %v355, %v354
    %v399 = vpack.c.bf16 %v357, %v356
    %v400 = vpack.c.bf16 %v359, %v358
    %v401 = vpack.c.bf16 %v361, %v360
    %v402 = vpack.c.bf16 %v363, %v362
    %v403 = vpack.c.bf16 %v365, %v364
    %v404 = vpack.c.bf16 %v367, %v366
    %v405 = vpack.c.bf16 %v369, %v368
    %v406 = vpack.c.bf16 %v371, %v370
    %v407 = vpack.c.bf16 %v373, %v372
    %v408 = vpack.c.bf16 %v375, %v374
    %v409 = vpack.c.bf16 %v377, %v376
    %v410 = vpack.c.bf16 %v379, %v378
    %v411 = vpack.c.bf16 %v381, %v380
    %v412 = vpack.c.bf16 %v383, %v382
    %v413 = vpack.c.bf16 %v385, %v384
    %v414 = vpack.c.bf16 %v387, %v386
    %v415 = vpack.c.bf16 %v389, %v388
    %v416 = vpack.c.bf16 %v391, %v390
    %v417 = vpack.c.bf16 %v393, %v392
    %v418 = vld [vmem:[%s2] sm:$0xf]
    %v419 = vld [vmem:[%s3] sm:$0x1]
    %v421 = vlaneseq
    %v422 = vshrl.u32 %v421, 7
    %v423 = vsub.s32 0, %v422
    %v424 = vrot.slane %v419, %v423
    %vm426 = vcmask 64512
    %v428 = vsel %vm426, %v394, 0
    %v431 = vsel %vm426, %v395, 0
    %v434 = vsel %vm426, %v396, 0
    %v437 = vsel %vm426, %v397, 0
    %v440 = vsel %vm426, %v398, 0
    %v443 = vsel %vm426, %v399, 0
    %v446 = vsel %vm426, %v400, 0
    %v449 = vsel %vm426, %v401, 0
    %v452 = vsel %vm426, %v402, 0
    %v455 = vsel %vm426, %v403, 0
    %v458 = vsel %vm426, %v404, 0
    %v461 = vsel %vm426, %v405, 0
    %v464 = vsel %vm426, %v406, 0
    %v467 = vsel %vm426, %v407, 0
    %v470 = vsel %vm426, %v408, 0
    %v473 = vsel %vm426, %v409, 0
    %v476 = vsel %vm426, %v410, 0
    %v479 = vsel %vm426, %v411, 0
    %v482 = vsel %vm426, %v412, 0
    %v485 = vsel %vm426, %v413, 0
    %v488 = vsel %vm426, %v414, 0
    %v491 = vsel %vm426, %v415, 0
    %v494 = vsel %vm426, %v416, 0
    %v497 = vsel %vm426, %v417, 0
    %vm499 = vcmask 1043456
    %v501 = vsel %vm499, %v418, 0
    %503 = vmatprep.subr.bf16.mxu0 0
    %504 = vmatpush1.bf16.msra.mxu0 %v501
    %505 = vmatprep.subr.bf16.mxu0 0
    %506 = vmatpush1.bf16.msra.mxu0 0
    %507 = vmatprep.subr.bf16.mxu0 0
    %508 = vmatpush1.bf16.msra.mxu0 0
    %509 = vmatprep.subr.bf16.mxu0 0
    %510 = vmatpush1.bf16.msra.mxu0 0
    %511 = vmatprep.subr.bf16.mxu0 0
    %512 = vmatpush1.bf16.msra.mxu0 0
    %513 = vmatprep.subr.bf16.mxu0 0
    %514 = vmatpush1.bf16.msra.mxu0 0
    %515 = vmatprep.subr.bf16.mxu0 0
    %516 = vmatpush1.bf16.msra.mxu0 0
    %517 = vmatprep.subr.bf16.mxu0 0
    %518 = vmatpush1.bf16.msra.mxu0 0
    %519 = vmatprep.subr.bf16.mxu0 0
    %520 = vmatpush1.bf16.msra.mxu0 0
    %521 = vmatprep.subr.bf16.mxu0 0
    %522 = vmatpush1.bf16.msra.mxu0 0
    %523 = vmatprep.subr.bf16.mxu0 0
    %524 = vmatpush1.bf16.msra.mxu0 0
    %525 = vmatprep.subr.bf16.mxu0 0
    %526 = vmatpush1.bf16.msra.mxu0 0
    %527 = vmatprep.subr.bf16.mxu0 0
    %528 = vmatpush1.bf16.msra.mxu0 0
    %529 = vmatprep.subr.bf16.mxu0 0
    %530 = vmatpush1.bf16.msra.mxu0 0
    %531 = vmatprep.subr.bf16.mxu0 0
    %532 = vmatpush1.bf16.msra.mxu0 0
    %533 = vmatprep.subr.bf16.mxu0 0
    %534 = vmatpush1.bf16.msra.mxu0 0
    %535 = vmatprep.mubr.bf16.mxu0 0
    %536 = vmatmul.mubr.bf16.gmra.mrb[0].mxu0 %v428
    %v537 = vpop.f32.mrb[0].mxu0
    %v538 = vadd.f32 %v424, %v537
    %v539 = vpop.f32.mrb[0].mxu0
    %v540 = vpop.f32.mrb[0].mxu0
    %v541 = vadd.f32 %v424, %v540
    %v542 = vpop.f32.mrb[0].mxu0
    %543 = vmatprep.mubr.bf16.mxu0 0
    %544 = vmatmul.mubr.bf16.gmra.mrb[0].mxu0 %v431
    %v545 = vpop.f32.mrb[0].mxu0
    %v546 = vadd.f32 %v424, %v545
    %v547 = vpop.f32.mrb[0].mxu0
    %v548 = vpop.f32.mrb[0].mxu0
    %v549 = vadd.f32 %v424, %v548
    %v550 = vpop.f32.mrb[0].mxu0
    %551 = vmatprep.mubr.bf16.mxu0 0
    %552 = vmatmul.mubr.bf16.gmra.mrb[0].mxu0 %v434
    %v553 = vpop.f32.mrb[0].mxu0
    %v554 = vadd.f32 %v424, %v553
    %v555 = vpop.f32.mrb[0].mxu0
    %v556 = vpop.f32.mrb[0].mxu0
    %v557 = vadd.f32 %v424, %v556
    %v558 = vpop.f32.mrb[0].mxu0
    %559 = vmatprep.mubr.bf16.mxu0 0
    %560 = vmatmul.mubr.bf16.gmra.mrb[0].mxu0 %v437
    %v561 = vpop.f32.mrb[0].mxu0
    %v562 = vadd.f32 %v424, %v561
    %v563 = vpop.f32.mrb[0].mxu0
    %v564 = vpop.f32.mrb[0].mxu0
    %v565 = vadd.f32 %v424, %v564
    %v566 = vpop.f32.mrb[0].mxu0
    %567 = vmatprep.mubr.bf16.mxu0 0
    %568 = vmatmul.mubr.bf16.gmra.mrb[0].mxu0 %v440
    %v569 = vpop.f32.mrb[0].mxu0
    %v570 = vadd.f32 %v424, %v569
    %v571 = vpop.f32.mrb[0].mxu0
    %v572 = vpop.f32.mrb[0].mxu0
    %v573 = vadd.f32 %v424, %v572
    %v574 = vpop.f32.mrb[0].mxu0
    %575 = vmatprep.mubr.bf16.mxu0 0
    %576 = vmatmul.mubr.bf16.gmra.mrb[0].mxu0 %v443
    %v577 = vpop.f32.mrb[0].mxu0
    %v578 = vadd.f32 %v424, %v577
    %v579 = vpop.f32.mrb[0].mxu0
    %v580 = vpop.f32.mrb[0].mxu0
    %v581 = vadd.f32 %v424, %v580
    %v582 = vpop.f32.mrb[0].mxu0
    %583 = vmatprep.mubr.bf16.mxu0 0
    %584 = vmatmul.mubr.bf16.gmra.mrb[0].mxu0 %v446
    %v585 = vpop.f32.mrb[0].mxu0
    %v586 = vadd.f32 %v424, %v585
    %v587 = vpop.f32.mrb[0].mxu0
    %v588 = vpop.f32.mrb[0].mxu0
    %v589 = vadd.f32 %v424, %v588
    %v590 = vpop.f32.mrb[0].mxu0
    %591 = vmatprep.mubr.bf16.mxu0 0
    %592 = vmatmul.mubr.bf16.gmra.mrb[0].mxu0 %v449
    %v593 = vpop.f32.mrb[0].mxu0
    %v594 = vadd.f32 %v424, %v593
    %v595 = vpop.f32.mrb[0].mxu0
    %v596 = vpop.f32.mrb[0].mxu0
    %v597 = vadd.f32 %v424, %v596
    %v598 = vpop.f32.mrb[0].mxu0
    %599 = vmatprep.mubr.bf16.mxu0 0
    %600 = vmatmul.mubr.bf16.gmra.mrb[0].mxu0 %v452
    %v601 = vpop.f32.mrb[0].mxu0
    %v602 = vadd.f32 %v424, %v601
    %v603 = vpop.f32.mrb[0].mxu0
    %v604 = vpop.f32.mrb[0].mxu0
    %v605 = vadd.f32 %v424, %v604
    %v606 = vpop.f32.mrb[0].mxu0
    %607 = vmatprep.mubr.bf16.mxu0 0
    %608 = vmatmul.mubr.bf16.gmra.mrb[0].mxu0 %v455
    %v609 = vpop.f32.mrb[0].mxu0
    %v610 = vadd.f32 %v424, %v609
    %v611 = vpop.f32.mrb[0].mxu0
    %v612 = vpop.f32.mrb[0].mxu0
    %v613 = vadd.f32 %v424, %v612
    %v614 = vpop.f32.mrb[0].mxu0
    %615 = vmatprep.mubr.bf16.mxu0 0
    %616 = vmatmul.mubr.bf16.gmra.mrb[0].mxu0 %v458
    %v617 = vpop.f32.mrb[0].mxu0
    %v618 = vadd.f32 %v424, %v617
    %v619 = vpop.f32.mrb[0].mxu0
    %v620 = vpop.f32.mrb[0].mxu0
    %v621 = vadd.f32 %v424, %v620
    %v622 = vpop.f32.mrb[0].mxu0
    %623 = vmatprep.mubr.bf16.mxu0 0
    %624 = vmatmul.mubr.bf16.gmra.mrb[0].mxu0 %v461
    %v625 = vpop.f32.mrb[0].mxu0
    %v626 = vadd.f32 %v424, %v625
    %v627 = vpop.f32.mrb[0].mxu0
    %v628 = vpop.f32.mrb[0].mxu0
    %v629 = vadd.f32 %v424, %v628
    %v630 = vpop.f32.mrb[0].mxu0
    %631 = vmatprep.mubr.bf16.mxu0 0
    %632 = vmatmul.mubr.bf16.gmra.mrb[0].mxu0 %v464
    %v633 = vpop.f32.mrb[0].mxu0
    %v634 = vadd.f32 %v424, %v633
    %v635 = vpop.f32.mrb[0].mxu0
    %v636 = vpop.f32.mrb[0].mxu0
    %v637 = vadd.f32 %v424, %v636
    %v638 = vpop.f32.mrb[0].mxu0
    %639 = vmatprep.mubr.bf16.mxu0 0
    %640 = vmatmul.mubr.bf16.gmra.mrb[0].mxu0 %v467
    %v641 = vpop.f32.mrb[0].mxu0
    %v642 = vadd.f32 %v424, %v641
    %v643 = vpop.f32.mrb[0].mxu0
    %v644 = vpop.f32.mrb[0].mxu0
    %v645 = vadd.f32 %v424, %v644
    %v646 = vpop.f32.mrb[0].mxu0
    %647 = vmatprep.mubr.bf16.mxu0 0
    %648 = vmatmul.mubr.bf16.gmra.mrb[0].mxu0 %v470
    %v649 = vpop.f32.mrb[0].mxu0
    %v650 = vadd.f32 %v424, %v649
    %v651 = vpop.f32.mrb[0].mxu0
    %v652 = vpop.f32.mrb[0].mxu0
    %v653 = vadd.f32 %v424, %v652
    %v654 = vpop.f32.mrb[0].mxu0
    %655 = vmatprep.mubr.bf16.mxu0 0
    %656 = vmatmul.mubr.bf16.gmra.mrb[0].mxu0 %v473
    %v657 = vpop.f32.mrb[0].mxu0
    %v658 = vadd.f32 %v424, %v657
    %v659 = vpop.f32.mrb[0].mxu0
    %v660 = vpop.f32.mrb[0].mxu0
    %v661 = vadd.f32 %v424, %v660
    %v662 = vpop.f32.mrb[0].mxu0
    %663 = vmatprep.mubr.bf16.mxu0 0
    %664 = vmatmul.mubr.bf16.gmra.mrb[0].mxu0 %v476
    %v665 = vpop.f32.mrb[0].mxu0
    %v666 = vadd.f32 %v424, %v665
    %v667 = vpop.f32.mrb[0].mxu0
    %v668 = vpop.f32.mrb[0].mxu0
    %v669 = vadd.f32 %v424, %v668
    %v670 = vpop.f32.mrb[0].mxu0
    %671 = vmatprep.mubr.bf16.mxu0 0
    %672 = vmatmul.mubr.bf16.gmra.mrb[0].mxu0 %v479
    %v673 = vpop.f32.mrb[0].mxu0
    %v674 = vadd.f32 %v424, %v673
    %v675 = vpop.f32.mrb[0].mxu0
    %v676 = vpop.f32.mrb[0].mxu0
    %v677 = vadd.f32 %v424, %v676
    %v678 = vpop.f32.mrb[0].mxu0
    %679 = vmatprep.mubr.bf16.mxu0 0
    %680 = vmatmul.mubr.bf16.gmra.mrb[0].mxu0 %v482
    %v681 = vpop.f32.mrb[0].mxu0
    %v682 = vadd.f32 %v424, %v681
    %v683 = vpop.f32.mrb[0].mxu0
    %v684 = vpop.f32.mrb[0].mxu0
    %v685 = vadd.f32 %v424, %v684
    %v686 = vpop.f32.mrb[0].mxu0
    %687 = vmatprep.mubr.bf16.mxu0 0
    %688 = vmatmul.mubr.bf16.gmra.mrb[0].mxu0 %v485
    %v689 = vpop.f32.mrb[0].mxu0
    %v690 = vadd.f32 %v424, %v689
    %v691 = vpop.f32.mrb[0].mxu0
    %v692 = vpop.f32.mrb[0].mxu0
    %v693 = vadd.f32 %v424, %v692
    %v694 = vpop.f32.mrb[0].mxu0
    %695 = vmatprep.mubr.bf16.mxu0 0
    %696 = vmatmul.mubr.bf16.gmra.mrb[0].mxu0 %v488
    %v697 = vpop.f32.mrb[0].mxu0
    %v698 = vadd.f32 %v424, %v697
    %v699 = vpop.f32.mrb[0].mxu0
    %v700 = vpop.f32.mrb[0].mxu0
    %v701 = vadd.f32 %v424, %v700
    %v702 = vpop.f32.mrb[0].mxu0
    %703 = vmatprep.mubr.bf16.mxu0 0
    %704 = vmatmul.mubr.bf16.gmra.mrb[0].mxu0 %v491
    %v705 = vpop.f32.mrb[0].mxu0
    %v706 = vadd.f32 %v424, %v705
    %v707 = vpop.f32.mrb[0].mxu0
    %v708 = vpop.f32.mrb[0].mxu0
    %v709 = vadd.f32 %v424, %v708
    %v710 = vpop.f32.mrb[0].mxu0
    %711 = vmatprep.mubr.bf16.mxu0 0
    %712 = vmatmul.mubr.bf16.gmra.mrb[0].mxu0 %v494
    %v713 = vpop.f32.mrb[0].mxu0
    %v714 = vadd.f32 %v424, %v713
    %v715 = vpop.f32.mrb[0].mxu0
    %v716 = vpop.f32.mrb[0].mxu0
    %v717 = vadd.f32 %v424, %v716
    %v718 = vpop.f32.mrb[0].mxu0
    %719 = vmatprep.mubr.bf16.mxu0 0
    %720 = vmatmul.mubr.bf16.gmra.mrb[0].mxu0 %v497
    %v721 = vpop.f32.mrb[0].mxu0
    %v722 = vadd.f32 %v424, %v721
    %v723 = vpop.f32.mrb[0].mxu0
    %v724 = vpop.f32.mrb[0].mxu0
    %v725 = vadd.f32 %v424, %v724
    %v726 = vpop.f32.mrb[0].mxu0
    %727 = vdwg.mxu0
    %v728 = vmax.f32 %v538, 0.0
    %v729 = vmax.f32 %v541, 0.0
    %v730 = vmax.f32 %v546, 0.0
    %v731 = vmax.f32 %v549, 0.0
    %v732 = vmax.f32 %v554, 0.0
    %v733 = vmax.f32 %v557, 0.0
    %v734 = vmax.f32 %v562, 0.0
    %v735 = vmax.f32 %v565, 0.0
    %v736 = vmax.f32 %v570, 0.0
    %v737 = vmax.f32 %v573, 0.0
    %v738 = vmax.f32 %v578, 0.0
    %v739 = vmax.f32 %v581, 0.0
    %v740 = vmax.f32 %v586, 0.0
    %v741 = vmax.f32 %v589, 0.0
    %v742 = vmax.f32 %v594, 0.0
    %v743 = vmax.f32 %v597, 0.0
    %v744 = vmax.f32 %v602, 0.0
    %v745 = vmax.f32 %v605, 0.0
    %v746 = vmax.f32 %v610, 0.0
    %v747 = vmax.f32 %v613, 0.0
    %v748 = vmax.f32 %v618, 0.0
    %v749 = vmax.f32 %v621, 0.0
    %v750 = vmax.f32 %v626, 0.0
    %v751 = vmax.f32 %v629, 0.0
    %v752 = vmax.f32 %v634, 0.0
    %v753 = vmax.f32 %v637, 0.0
    %v754 = vmax.f32 %v642, 0.0
    %v755 = vmax.f32 %v645, 0.0
    %v756 = vmax.f32 %v650, 0.0
    %v757 = vmax.f32 %v653, 0.0
    %v758 = vmax.f32 %v658, 0.0
    %v759 = vmax.f32 %v661, 0.0
    %v760 = vmax.f32 %v666, 0.0
    %v761 = vmax.f32 %v669, 0.0
    %v762 = vmax.f32 %v674, 0.0
    %v763 = vmax.f32 %v677, 0.0
    %v764 = vmax.f32 %v682, 0.0
    %v765 = vmax.f32 %v685, 0.0
    %v766 = vmax.f32 %v690, 0.0
    %v767 = vmax.f32 %v693, 0.0
    %v768 = vmax.f32 %v698, 0.0
    %v769 = vmax.f32 %v701, 0.0
    %v770 = vmax.f32 %v706, 0.0
    %v771 = vmax.f32 %v709, 0.0
    %v772 = vmax.f32 %v714, 0.0
    %v773 = vmax.f32 %v717, 0.0
    %v774 = vmax.f32 %v722, 0.0
    %v775 = vmax.f32 %v725, 0.0
    %v776 = vlaneseq
    %v777 = vshrl.u32 %v776, 7
    %v778 = vsub.s32 0, %v777
    %v779 = vrot.slane %v92, %v778
    %v780 = vlaneseq
    %v781 = vshrl.u32 %v780, 7
    %v782 = vsub.s32 1, %v781
    %v783 = vrot.slane %v92, %v782
    %v784 = vlaneseq
    %v785 = vshrl.u32 %v784, 7
    %v786 = vsub.s32 2, %v785
    %v787 = vrot.slane %v92, %v786
    %vm788 = vcmp.eq.s32.totalorder %v95, %v779
    %vm789 = vcmp.eq.s32.totalorder %v95, %v783
    %vm790 = vcmp.eq.s32.totalorder %v95, %v787
    %v791 = vsel %vm247, 1, 0
    %v792 = vsel %vm248, 1, 0
    %v793 = vsel %vm249, 1, 0
    %vm794 = vcmp.eq.s32.totalorder %v791, 1
    %vm795 = vcmp.eq.s32.totalorder %v792, 1
    %vm796 = vcmp.eq.s32.totalorder %v793, 1
    %vm797 = vmand %vm788, %vm794
    %vm798 = vmand %vm789, %vm795
    %vm799 = vmand %vm790, %vm796
    %v800 = vsel %vm797, 1, 0
    %v801 = vsel %vm798, 1, 0
    %v802 = vsel %vm799, 1, 0
    %v803 = vcvt.s32.f32 %v800
    %v804 = vcvt.s32.f32 %v801
    %v805 = vcvt.s32.f32 %v802
    %v806 = vpack.c.bf16 %v803, %v803
    %v807 = vpack.c.bf16 %v804, %v804
    %v808 = vpack.c.bf16 %v805, %v805
    %v809 = vld [vmem:[#allocation2] sm:$0x7]
    %v810 = vpack.c.bf16 %v729, %v728
    %v811 = vpack.c.bf16 %v731, %v730
    %v812 = vpack.c.bf16 %v733, %v732
    %v813 = vpack.c.bf16 %v735, %v734
    %v814 = vpack.c.bf16 %v737, %v736
    %v815 = vpack.c.bf16 %v739, %v738
    %v816 = vpack.c.bf16 %v741, %v740
    %v817 = vpack.c.bf16 %v743, %v742
    %v818 = vpack.c.bf16 %v745, %v744
    %v819 = vpack.c.bf16 %v747, %v746
    %v820 = vpack.c.bf16 %v749, %v748
    %v821 = vpack.c.bf16 %v751, %v750
    %v822 = vpack.c.bf16 %v753, %v752
    %v823 = vpack.c.bf16 %v755, %v754
    %v824 = vpack.c.bf16 %v757, %v756
    %v825 = vpack.c.bf16 %v759, %v758
    %v826 = vpack.c.bf16 %v761, %v760
    %v827 = vpack.c.bf16 %v763, %v762
    %v828 = vpack.c.bf16 %v765, %v764
    %v829 = vpack.c.bf16 %v767, %v766
    %v830 = vpack.c.bf16 %v769, %v768
    %v831 = vpack.c.bf16 %v771, %v770
    %v832 = vpack.c.bf16 %v773, %v772
    %v833 = vpack.c.bf16 %v775, %v774
    %834 = vmatprep.subr.bf16.mxu0 0
    %835 = vmatpush1.bf16.msra.mxu0 %v810
    %836 = vmatprep.subr.bf16.mxu0 0
    %837 = vmatpush1.bf16.msra.mxu0 %v811
    %838 = vmatprep.subr.bf16.mxu0 0
    %839 = vmatpush1.bf16.msra.mxu0 %v812
    %840 = vmatprep.subr.bf16.mxu0 0
    %841 = vmatpush1.bf16.msra.mxu0 %v813
    %842 = vmatprep.subr.bf16.mxu0 0
    %843 = vmatpush1.bf16.msra.mxu0 %v814
    %844 = vmatprep.subr.bf16.mxu0 0
    %845 = vmatpush1.bf16.msra.mxu0 %v815
    %846 = vmatprep.subr.bf16.mxu0 0
    %847 = vmatpush1.bf16.msra.mxu0 %v816
    %848 = vmatprep.subr.bf16.mxu0 0
    %849 = vmatpush1.bf16.msra.mxu0 %v817
    %850 = vmatprep.subr.bf16.mxu0 0
    %851 = vmatpush1.bf16.msra.mxu0 %v818
    %852 = vmatprep.subr.bf16.mxu0 0
    %853 = vmatpush1.bf16.msra.mxu0 %v819
    %854 = vmatprep.subr.bf16.mxu0 0
    %855 = vmatpush1.bf16.msra.mxu0 %v820
    %856 = vmatprep.subr.bf16.mxu0 0
    %857 = vmatpush1.bf16.msra.mxu0 %v821
    %858 = vmatprep.subr.bf16.mxu0 0
    %859 = vmatpush1.bf16.msra.mxu0 %v822
    %860 = vmatprep.subr.bf16.mxu0 0
    %861 = vmatpush1.bf16.msra.mxu0 %v823
    %862 = vmatprep.subr.bf16.mxu0 0
    %863 = vmatpush1.bf16.msra.mxu0 %v824
    %864 = vmatprep.subr.bf16.mxu0 0
    %865 = vmatpush1.bf16.msra.mxu0 %v825
    %866 = vmatprep.mubr.bf16.mxu0 %v807
    %867 = vmatmul.mubr.bf16.gmra.mrb[0].mxu0 %v806
    %v868 = vpop.f32.mrb[0].mxu0
    %v869 = vadd.f32 0.0, %v868
    %v870 = vpop.f32.mrb[0].mxu0
    %v871 = vpop.f32.mrb[0].mxu0
    %v872 = vpop.f32.mrb[0].mxu0
    %873 = vdwg.mxu0
    %874 = vmatprep.subr.bf16.mxu0 0
    %875 = vmatpush1.bf16.msra.mxu0 %v826
    %876 = vmatprep.subr.bf16.mxu0 0
    %877 = vmatpush1.bf16.msra.mxu0 %v827
    %878 = vmatprep.subr.bf16.mxu0 0
    %879 = vmatpush1.bf16.msra.mxu0 %v828
    %880 = vmatprep.subr.bf16.mxu0 0
    %881 = vmatpush1.bf16.msra.mxu0 %v829
    %882 = vmatprep.subr.bf16.mxu0 0
    %883 = vmatpush1.bf16.msra.mxu0 %v830
    %884 = vmatprep.subr.bf16.mxu0 0
    %885 = vmatpush1.bf16.msra.mxu0 %v831
    %886 = vmatprep.subr.bf16.mxu0 0
    %887 = vmatpush1.bf16.msra.mxu0 %v832
    %888 = vmatprep.subr.bf16.mxu0 0
    %889 = vmatpush1.bf16.msra.mxu0 %v833
    %890 = vmatprep.subr.bf16.mxu0 0
    %891 = vmatpush1.bf16.msra.mxu0 0
    %892 = vmatprep.subr.bf16.mxu0 0
    %893 = vmatpush1.bf16.msra.mxu0 0
    %894 = vmatprep.subr.bf16.mxu0 0
    %895 = vmatpush1.bf16.msra.mxu0 0
    %896 = vmatprep.subr.bf16.mxu0 0
    %897 = vmatpush1.bf16.msra.mxu0 0
    %898 = vmatprep.subr.bf16.mxu0 0
    %899 = vmatpush1.bf16.msra.mxu0 0
    %900 = vmatprep.subr.bf16.mxu0 0
    %901 = vmatpush1.bf16.msra.mxu0 0
    %902 = vmatprep.subr.bf16.mxu0 0
    %903 = vmatpush1.bf16.msra.mxu0 0
    %904 = vmatprep.subr.bf16.mxu0 0
    %905 = vmatpush1.bf16.msra.mxu0 0
    %906 = vmatprep.mubr.bf16.mxu0 0
    %907 = vmatmul.mubr.bf16.gmra.mrb[0].mxu0 %v808
    %v908 = vpop.f32.mrb[0].mxu0
    %v909 = vadd.f32 %v869, %v908
    %v910 = vpop.f32.mrb[0].mxu0
    %v911 = vpop.f32.mrb[0].mxu0
    %v912 = vpop.f32.mrb[0].mxu0
    %913 = vdwg.mxu0
    %v914 = vadd.f32 %v809, %v909
    %915 = vst [vmem:[#allocation2] sm:$0x7] %v914
    %v916 = vld [vmem:[#allocation3] sm:$0x7]
    %v917 = vunpack.c.l.bf16 %v806
    %v918 = vunpack.c.l.bf16 %v807
    %v919 = vunpack.c.l.bf16 %v808
    %vm920 = vcmask 1042432
    %v921 = vsel %vm920, %v917, 0.0
    %v922 = vsel %vm920, %v918, 0.0
    %v923 = vadd.f32 %v921, %v922
    %v924 = vsel %vm920, %v919, 0.0
    %v925 = vadd.f32 %v923, %v924
    %926 = vadd.xlane.f32.xlu0 %v925
    %v927 = vpop.xlane.xlu0 %926
    %v928 = vadd.f32 %v916, %v927
    %vm929 = vcmask 2048
    %930 = vst.msk [vmem:[#allocation3] sm:$0x7] %vm929, %v928
    // Predicated region
    $region46: #{tpu_custom_call.1} parent=1 // pred_check
      %p931 = pneg %p37
    $region47: #{tpu_custom_call.1} parent=1 // pred_check_branch
      %933 = sbr.rel (%p931) target = $region49
    $region48: #{tpu_custom_call.1} parent=1 // pred_region
      %v934 = vld [vmem:[#allocation3] sm:$0x7]
      %v935 = vmax.f32 %v934, 1.0
      %v936 = vrcp.pop %v935
      %v937 = vmul.f32 1.0, %v936
      %v938 = vld [vmem:[#allocation2] sm:$0x7]
      %940 = vset.pattern.permute.xlu0 0
      %941 = vperm.xlu0 %940, %v937
      %v942 = vpop.permute.xlu0 %941
      %v944 = vmul.f32 %v938, %v942
      %vm945 = vcmp.gt.f32.partialorder %v934, 0.0
      %v946 = vsel %vm945, 1, 0
      %v947 = vcvt.s32.f32 %v946
      %v948 = vpack.c.bf16 %v944, %v944
      %v949 = vld [vmem:[%s4] sm:$0xf]
      %v950 = vld [vmem:[%s4 + $0x4] sm:$0xf]
      %v951 = vld [vmem:[%s4 + $0x8] sm:$0xf]
      %v952 = vld [vmem:[%s4 + $0xc] sm:$0xf]
      %v953 = vld [vmem:[%s4 + $0x10] sm:$0xf]
      %v954 = vld [vmem:[%s4 + $0x14] sm:$0xf]
      %v955 = vld [vmem:[%s4 + $0x18] sm:$0xf]
      %v956 = vld [vmem:[%s4 + $0x1c] sm:$0xf]
      %v957 = vld [vmem:[%s4 + $0x20] sm:$0xf]
      %v958 = vld [vmem:[%s4 + $0x24] sm:$0xf]
      %v959 = vld [vmem:[%s4 + $0x28] sm:$0xf]
      %v960 = vld [vmem:[%s4 + $0x2c] sm:$0xf]
      %v961 = vld [vmem:[%s4 + $0x30] sm:$0xf]
      %v962 = vld [vmem:[%s4 + $0x34] sm:$0xf]
      %v963 = vld [vmem:[%s4 + $0x38] sm:$0xf]
      %v964 = vld [vmem:[%s4 + $0x3c] sm:$0xf]
      %v965 = vld [vmem:[%s5] sm:$0x1]
      %v967 = vlaneseq
      %v968 = vshrl.u32 %v967, 7
      %v969 = vsub.s32 0, %v968
      %v970 = vrot.slane %v965, %v969
      %973 = vset.pattern.permute.xlu0 0
      %974 = vperm.xlu0 %973, %v947
      %v975 = vpop.permute.xlu0 %974
      %v977 = vmul.f32 %v970, %v975
      %v994 = vunpack.c.l.b16 %v949
      %v995 = vunpack.c.l.b16 %v950
      %v996 = vunpack.c.l.b16 %v951
      %v997 = vunpack.c.l.b16 %v952
      %v998 = vunpack.c.l.b16 %v953
      %v999 = vunpack.c.l.b16 %v954
      %v1000 = vunpack.c.l.b16 %v955
      %v1001 = vunpack.c.l.b16 %v956
      %v1002 = vunpack.c.l.b16 %v957
      %v1003 = vunpack.c.l.b16 %v958
      %v1004 = vunpack.c.l.b16 %v959
      %v1005 = vunpack.c.l.b16 %v960
      %v1006 = vunpack.c.l.b16 %v961
      %v1007 = vunpack.c.l.b16 %v962
      %v1008 = vunpack.c.l.b16 %v963
      %v1009 = vunpack.c.l.b16 %v964
      %v1010 = vpack.c.b16 %v995, %v994
      %v1011 = vpack.c.b16 %v997, %v996
      %v1012 = vpack.c.b16 %v999, %v998
      %v1013 = vpack.c.b16 %v1001, %v1000
      %v1014 = vpack.c.b16 %v1003, %v1002
      %v1015 = vpack.c.b16 %v1005, %v1004
      %v1016 = vpack.c.b16 %v1007, %v1006
      %v1017 = vpack.c.b16 %v1009, %v1008
      %1026 = vmatprep.subr.bf16.mxu0 0
      %1027 = vmatpush1.bf16.msra.mxu0 %v1010
      %1028 = vmatprep.subr.bf16.mxu0 0
      %1029 = vmatpush1.bf16.msra.mxu0 %v1011
      %1030 = vmatprep.subr.bf16.mxu0 0
      %1031 = vmatpush1.bf16.msra.mxu0 %v1012
      %1032 = vmatprep.subr.bf16.mxu0 0
      %1033 = vmatpush1.bf16.msra.mxu0 %v1013
      %1034 = vmatprep.subr.bf16.mxu0 0
      %1035 = vmatpush1.bf16.msra.mxu0 %v1014
      %1036 = vmatprep.subr.bf16.mxu0 0
      %1037 = vmatpush1.bf16.msra.mxu0 %v1015
      %1038 = vmatprep.subr.bf16.mxu0 0
      %1039 = vmatpush1.bf16.msra.mxu0 %v1016
      %1040 = vmatprep.subr.bf16.mxu0 0
      %1041 = vmatpush1.bf16.msra.mxu0 %v1017
      %1042 = vmatprep.subr.bf16.mxu0 0
      %1043 = vmatpush1.bf16.msra.mxu0 0
      %1044 = vmatprep.subr.bf16.mxu0 0
      %1045 = vmatpush1.bf16.msra.mxu0 0
      %1046 = vmatprep.subr.bf16.mxu0 0
      %1047 = vmatpush1.bf16.msra.mxu0 0
      %1048 = vmatprep.subr.bf16.mxu0 0
      %1049 = vmatpush1.bf16.msra.mxu0 0
      %1050 = vmatprep.subr.bf16.mxu0 0
      %1051 = vmatpush1.bf16.msra.mxu0 0
      %1052 = vmatprep.subr.bf16.mxu0 0
      %1053 = vmatpush1.bf16.msra.mxu0 0
      %1054 = vmatprep.subr.bf16.mxu0 0
      %1055 = vmatpush1.bf16.msra.mxu0 0
      %1056 = vmatprep.subr.bf16.mxu0 0
      %1057 = vmatpush1.bf16.msra.mxu0 0
      %1058 = vmatprep.mubr.bf16.mxu0 0
      %1059 = vmatmul.mubr.bf16.gmra.mrb[0].mxu0 %v948
      %v1060 = vpop.f32.mrb[0].mxu0
      %v1061 = vadd.f32 %v977, %v1060
      %v1062 = vpop.f32.mrb[0].mxu0
      %v1063 = vpop.f32.mrb[0].mxu0
      %v1064 = vpop.f32.mrb[0].mxu0
      %1065 = vdwg.mxu0
      %v1066 = vpack.c.bf16 %v1061, %v1061
      %v1067 = vld [vmem:[%s6] sm:$0xf]
      %v1068 = vld [vmem:[%s6 + $0x4] sm:$0xf]
      %v1069 = vld [vmem:[%s6 + $0x8] sm:$0xf]
      %v1070 = vld [vmem:[%s6 + $0xc] sm:$0xf]
      %v1071 = vld [vmem:[%s6 + $0x10] sm:$0xf]
      %v1072 = vld [vmem:[%s6 + $0x14] sm:$0xf]
      %v1073 = vld [vmem:[%s6 + $0x18] sm:$0xf]
      %v1074 = vld [vmem:[%s6 + $0x1c] sm:$0xf]
      %v1075 = vld [vmem:[%s6 + $0x20] sm:$0xf]
      %v1076 = vld [vmem:[%s6 + $0x24] sm:$0xf]
      %v1077 = vld [vmem:[%s6 + $0x28] sm:$0xf]
      %v1078 = vld [vmem:[%s6 + $0x2c] sm:$0xf]
      %v1079 = vld [vmem:[%s6 + $0x30] sm:$0xf]
      %v1080 = vld [vmem:[%s6 + $0x34] sm:$0xf]
      %v1081 = vld [vmem:[%s6 + $0x38] sm:$0xf]
      %v1082 = vld [vmem:[%s6 + $0x3c] sm:$0xf]
      %v1083 = vld [vmem:[%s7] sm:$0x1]
      %v1085 = vlaneseq
      %v1086 = vshrl.u32 %v1085, 7
      %v1087 = vsub.s32 0, %v1086
      %v1088 = vrot.slane %v1083, %v1087
      %v1106 = vunpack.c.l.b16 %v1067
      %v1107 = vunpack.c.l.b16 %v1068
      %v1108 = vunpack.c.l.b16 %v1069
      %v1109 = vunpack.c.l.b16 %v1070
      %v1110 = vunpack.c.l.b16 %v1071
      %v1111 = vunpack.c.l.b16 %v1072
      %v1112 = vunpack.c.l.b16 %v1073
      %v1113 = vunpack.c.l.b16 %v1074
      %v1114 = vunpack.c.l.b16 %v1075
      %v1115 = vunpack.c.l.b16 %v1076
      %v1116 = vunpack.c.l.b16 %v1077
      %v1117 = vunpack.c.l.b16 %v1078
      %v1118 = vunpack.c.l.b16 %v1079
      %v1119 = vunpack.c.l.b16 %v1080
      %v1120 = vunpack.c.l.b16 %v1081
      %v1121 = vunpack.c.l.b16 %v1082
      %v1122 = vpack.c.b16 %v1107, %v1106
      %v1123 = vpack.c.b16 %v1109, %v1108
      %v1124 = vpack.c.b16 %v1111, %v1110
      %v1125 = vpack.c.b16 %v1113, %v1112
      %v1126 = vpack.c.b16 %v1115, %v1114
      %v1127 = vpack.c.b16 %v1117, %v1116
      %v1128 = vpack.c.b16 %v1119, %v1118
      %v1129 = vpack.c.b16 %v1121, %v1120
      %1138 = vmatprep.subr.bf16.mxu0 0
      %1139 = vmatpush1.bf16.msra.mxu0 %v1122
      %1140 = vmatprep.subr.bf16.mxu0 0
      %1141 = vmatpush1.bf16.msra.mxu0 %v1123
      %1142 = vmatprep.subr.bf16.mxu0 0
      %1143 = vmatpush1.bf16.msra.mxu0 %v1124
      %1144 = vmatprep.subr.bf16.mxu0 0
      %1145 = vmatpush1.bf16.msra.mxu0 %v1125
      %1146 = vmatprep.subr.bf16.mxu0 0
      %1147 = vmatpush1.bf16.msra.mxu0 %v1126
      %1148 = vmatprep.subr.bf16.mxu0 0
      %1149 = vmatpush1.bf16.msra.mxu0 %v1127
      %1150 = vmatprep.subr.bf16.mxu0 0
      %1151 = vmatpush1.bf16.msra.mxu0 %v1128
      %1152 = vmatprep.subr.bf16.mxu0 0
      %1153 = vmatpush1.bf16.msra.mxu0 %v1129
      %1154 = vmatprep.subr.bf16.mxu0 0
      %1155 = vmatpush1.bf16.msra.mxu0 0
      %1156 = vmatprep.subr.bf16.mxu0 0
      %1157 = vmatpush1.bf16.msra.mxu0 0
      %1158 = vmatprep.subr.bf16.mxu0 0
      %1159 = vmatpush1.bf16.msra.mxu0 0
      %1160 = vmatprep.subr.bf16.mxu0 0
      %1161 = vmatpush1.bf16.msra.mxu0 0
      %1162 = vmatprep.subr.bf16.mxu0 0
      %1163 = vmatpush1.bf16.msra.mxu0 0
      %1164 = vmatprep.subr.bf16.mxu0 0
      %1165 = vmatpush1.bf16.msra.mxu0 0
      %1166 = vmatprep.subr.bf16.mxu0 0
      %1167 = vmatpush1.bf16.msra.mxu0 0
      %1168 = vmatprep.subr.bf16.mxu0 0
      %1169 = vmatpush1.bf16.msra.mxu0 0
      %1170 = vmatprep.mubr.bf16.mxu0 0
      %1171 = vmatmul.mubr.bf16.gmra.mrb[0].mxu0 %v1066
      %v1172 = vpop.f32.mrb[0].mxu0
      %v1173 = vadd.f32 %v1088, %v1172
      %v1174 = vpop.f32.mrb[0].mxu0
      %v1175 = vpop.f32.mrb[0].mxu0
      %v1176 = vpop.f32.mrb[0].mxu0
      %1177 = vdwg.mxu0
      %v1178 = vmax.f32 %v1173, 0.0
      %v1179 = vpack.c.bf16 %v1178, %v1178
      %v1180 = vld [vmem:[%s8] sm:$0xf]
      %v1181 = vld [vmem:[%s8 + $0x4] sm:$0xf]
      %v1182 = vld [vmem:[%s8 + $0x8] sm:$0xf]
      %v1183 = vld [vmem:[%s8 + $0xc] sm:$0xf]
      %v1184 = vld [vmem:[%s8 + $0x10] sm:$0xf]
      %v1185 = vld [vmem:[%s8 + $0x14] sm:$0xf]
      %v1186 = vld [vmem:[%s8 + $0x18] sm:$0xf]
      %v1187 = vld [vmem:[%s8 + $0x1c] sm:$0xf]
      %v1188 = vld [vmem:[%s8 + $0x20] sm:$0xf]
      %v1189 = vld [vmem:[%s8 + $0x24] sm:$0xf]
      %v1190 = vld [vmem:[%s8 + $0x28] sm:$0xf]
      %v1191 = vld [vmem:[%s8 + $0x2c] sm:$0xf]
      %v1192 = vld [vmem:[%s8 + $0x30] sm:$0xf]
      %v1193 = vld [vmem:[%s8 + $0x34] sm:$0xf]
      %v1194 = vld [vmem:[%s8 + $0x38] sm:$0xf]
      %v1195 = vld [vmem:[%s8 + $0x3c] sm:$0xf]
      %v1196 = vld [vmem:[%s9] sm:$0x1]
      %v1198 = vlaneseq
      %v1199 = vshrl.u32 %v1198, 7
      %v1200 = vsub.s32 0, %v1199
      %v1201 = vrot.slane %v1196, %v1200
      %v1219 = vunpack.c.l.b16 %v1180
      %v1220 = vunpack.c.l.b16 %v1181
      %v1221 = vunpack.c.l.b16 %v1182
      %v1222 = vunpack.c.l.b16 %v1183
      %v1223 = vunpack.c.l.b16 %v1184
      %v1224 = vunpack.c.l.b16 %v1185
      %v1225 = vunpack.c.l.b16 %v1186
      %v1226 = vunpack.c.l.b16 %v1187
      %v1227 = vunpack.c.l.b16 %v1188
      %v1228 = vunpack.c.l.b16 %v1189
      %v1229 = vunpack.c.l.b16 %v1190
      %v1230 = vunpack.c.l.b16 %v1191
      %v1231 = vunpack.c.l.b16 %v1192
      %v1232 = vunpack.c.l.b16 %v1193
      %v1233 = vunpack.c.l.b16 %v1194
      %v1234 = vunpack.c.l.b16 %v1195
      %v1235 = vpack.c.b16 %v1220, %v1219
      %v1236 = vpack.c.b16 %v1222, %v1221
      %v1237 = vpack.c.b16 %v1224, %v1223
      %v1238 = vpack.c.b16 %v1226, %v1225
      %v1239 = vpack.c.b16 %v1228, %v1227
      %v1240 = vpack.c.b16 %v1230, %v1229
      %v1241 = vpack.c.b16 %v1232, %v1231
      %v1242 = vpack.c.b16 %v1234, %v1233
      %1251 = vmatprep.subr.bf16.mxu0 0
      %1252 = vmatpush1.bf16.msra.mxu0 %v1235
      %1253 = vmatprep.subr.bf16.mxu0 0
      %1254 = vmatpush1.bf16.msra.mxu0 %v1236
      %1255 = vmatprep.subr.bf16.mxu0 0
      %1256 = vmatpush1.bf16.msra.mxu0 %v1237
      %1257 = vmatprep.subr.bf16.mxu0 0
      %1258 = vmatpush1.bf16.msra.mxu0 %v1238
      %1259 = vmatprep.subr.bf16.mxu0 0
      %1260 = vmatpush1.bf16.msra.mxu0 %v1239
      %1261 = vmatprep.subr.bf16.mxu0 0
      %1262 = vmatpush1.bf16.msra.mxu0 %v1240
      %1263 = vmatprep.subr.bf16.mxu0 0
      %1264 = vmatpush1.bf16.msra.mxu0 %v1241
      %1265 = vmatprep.subr.bf16.mxu0 0
      %1266 = vmatpush1.bf16.msra.mxu0 %v1242
      %1267 = vmatprep.subr.bf16.mxu0 0
      %1268 = vmatpush1.bf16.msra.mxu0 0
      %1269 = vmatprep.subr.bf16.mxu0 0
      %1270 = vmatpush1.bf16.msra.mxu0 0
      %1271 = vmatprep.subr.bf16.mxu0 0
      %1272 = vmatpush1.bf16.msra.mxu0 0
      %1273 = vmatprep.subr.bf16.mxu0 0
      %1274 = vmatpush1.bf16.msra.mxu0 0
      %1275 = vmatprep.subr.bf16.mxu0 0
      %1276 = vmatpush1.bf16.msra.mxu0 0
      %1277 = vmatprep.subr.bf16.mxu0 0
      %1278 = vmatpush1.bf16.msra.mxu0 0
      %1279 = vmatprep.subr.bf16.mxu0 0
      %1280 = vmatpush1.bf16.msra.mxu0 0
      %1281 = vmatprep.subr.bf16.mxu0 0
      %1282 = vmatpush1.bf16.msra.mxu0 0
      %1283 = vmatprep.mubr.bf16.mxu0 0
      %1284 = vmatmul.mubr.bf16.gmra.mrb[0].mxu0 %v1179
      %v1285 = vpop.f32.mrb[0].mxu0
      %v1286 = vadd.f32 %v1201, %v1285
      %v1287 = vpop.f32.mrb[0].mxu0
      %v1288 = vpop.f32.mrb[0].mxu0
      %v1289 = vpop.f32.mrb[0].mxu0
      %1290 = vdwg.mxu0
      %1291 = vst [vmem:[#allocation4] sm:$0x7] %v1286
    $region49: #{tpu_custom_call.1} parent=1 // pred_fallthru
      _
    // Predicated region
    $region50: #{tpu_custom_call.1} parent=1 // pred_check
      _
    $region51: #{tpu_custom_call.1} parent=1 // pred_check_branch
      %1293 = sbr.rel (0) target = $region53
    $region52: #{tpu_custom_call.1} parent=1 // pred_region
      %s1295 = ssub.s32 64, 64
      %1296 = vsyncadd [#allocation5], %s1295
      %s1298 = sshll.u32 [#allocation4], 4
      %s1299 = int_to_ptr.vmem [resolvable:$true] %s1298
      %1301 = dma.vmem_to_hbm [thread:$0]  %s1299, 64, %s10, [#allocation5]
    $region53: #{tpu_custom_call.1} parent=1 // pred_fallthru
      _
    // Predicated region
    $region54: #{tpu_custom_call.1} parent=1 // pred_check
      _
    $region55: #{tpu_custom_call.1} parent=1 // pred_check_branch
      %1303 = sbr.rel (0) target = $region57
    $region56: #{tpu_custom_call.1} parent=1 // pred_region
      %1304 = dma.done [#allocation5], 64
    $region57: #{tpu_custom_call.1} parent=1 // pred_fallthru
      _
    %1305 = vsyncpa [#allocation5], 1

</llo_original>
